<compile_context>
chip_gen: v5e
topology: v5e:2x2
jax: 0.10.0
libtpu: 0.0.40
codegen_flags: <defaults>
</compile_context>

<pallas_src>
import functools
import math

import jax
import jax.numpy as jnp
from jax import lax
from jax.experimental import pallas as pl
from jax.experimental.pallas import tpu as pltpu


# ------------------------------ fused MHA kernel ----------------------------

def _mha_kernel(xq_ref, xk_ref, xv_ref, mrow_ref, mcol_ref,
                wq_ref, bq_ref, wk_ref, bk_ref, wv_ref, bv_ref,
                wo_ref, bo_ref,
                out_ref, scores_ref,
                *, heads, d_k, scale, matmul_dtype):
    xq = xq_ref[0]                      # (Sq, D)
    xk = xk_ref[0]                      # (Sk, D)
    xv = xv_ref[0]                      # (Sk, D)
    Sq = xq.shape[0]
    D = heads * d_k

    def mm(a, b):
        return jnp.dot(a.astype(matmul_dtype), b.astype(matmul_dtype),
                       preferred_element_type=jnp.float32)

    # QKV projections (lane-dense, one MXU matmul each).
    q = mm(xq, wq_ref[...]) + bq_ref[...]          # (Sq, D) f32
    k = mm(xk, wk_ref[...]) + bk_ref[...]          # (Sk, D) f32
    v = mm(xv, wv_ref[...]) + bv_ref[...]          # (Sk, D) f32

    # In-kernel outer-product mask, matches
    #   mask.unsqueeze(-1).matmul(mask.unsqueeze(-2)) == 0
    mrow = mrow_ref[0]                              # (1, Sk)
    mcol = mcol_ref[0]                              # (Sq, 1)
    mask2d = mcol * mrow                            # (Sq, Sk)
    neg = jnp.float32(-1e9)

    # Output projection folded into the head loop: concat @ Wo + bo
    #   == bo + sum_h (attn_h @ v_h) @ Wo[h*d_k:(h+1)*d_k, :]
    acc = jnp.zeros((Sq, D), jnp.float32) + bo_ref[...]

    for h in range(heads):                          # static unroll over heads
        lo = h * d_k
        qh = q[:, lo:lo + d_k]                      # (Sq, d_k)
        kh = k[:, lo:lo + d_k]                      # (Sk, d_k)
        vh = v[:, lo:lo + d_k]                      # (Sk, d_k)

        # scores_h = q_h k_h^T / sqrt(d_k)   (contract d_k, no explicit .T)
        s = lax.dot_general(qh.astype(matmul_dtype), kh.astype(matmul_dtype),
                            (((1,), (1,)), ((), ())),
                            preferred_element_type=jnp.float32) * scale
        # masking + softmax kept in float32
        s = jnp.where(mask2d == 0.0, neg, s)
        s = s - jnp.max(s, axis=-1, keepdims=True)
        p = jnp.exp(s)
        p = p * pl.reciprocal(jnp.sum(p, axis=-1, keepdims=True), approx=True)

        scores_ref[0, h] = p                        # (Sq, Sk)

        oh = jnp.dot(p.astype(matmul_dtype), vh.astype(matmul_dtype),
                     preferred_element_type=jnp.float32)          # (Sq, d_k)
        acc = acc + jnp.dot(oh.astype(matmul_dtype),
                            wo_ref[lo:lo + d_k, :].astype(matmul_dtype),
                            preferred_element_type=jnp.float32)   # (Sq, D)

    out_ref[0] = acc.astype(out_ref.dtype)


def multi_head_attention(params, q, k, v, mask=None, *, heads,
                         matmul_dtype=jnp.float32):
    """Fused MHA forward. q,k,v: (B,S,d_model); mask: (B,S) (1=keep, 0=masked).

    Returns (output (B,Sq,d_model), scores (B,H,Sq,Sk)) like the PyTorch module.
    """
    B, Sq, D = q.shape
    Sk = k.shape[1]
    assert k.shape == (B, Sk, D) and v.shape == (B, Sk, D)
    assert Sq == Sk, "reference mask outer product requires Sq == Sk"
    assert D % heads == 0
    d_k = D // heads

    if mask is None:
        mask = jnp.ones((B, Sq), jnp.float32)
    mask = mask.astype(jnp.float32)
    mask_row = mask.reshape(B, 1, Sk)     # broadcast over query positions
    mask_col = mask.reshape(B, Sq, 1)     # broadcast over key positions

    kernel = functools.partial(
        _mha_kernel, heads=heads, d_k=d_k,
        scale=1.0 / math.sqrt(d_k), matmul_dtype=matmul_dtype)

    b1d = lambda a: a.reshape(1, D)

    out, scores = pl.pallas_call(
        kernel,
        out_shape=(jax.ShapeDtypeStruct((B, Sq, D), jnp.float32),
                   jax.ShapeDtypeStruct((B, heads, Sq, Sk), jnp.float32)),
        grid=(B,),
        in_specs=[
            pl.BlockSpec((1, Sq, D), lambda b: (b, 0, 0)),      # x_q
            pl.BlockSpec((1, Sk, D), lambda b: (b, 0, 0)),      # x_k
            pl.BlockSpec((1, Sk, D), lambda b: (b, 0, 0)),      # x_v
            pl.BlockSpec((1, 1, Sk), lambda b: (b, 0, 0)),      # mask row view
            pl.BlockSpec((1, Sq, 1), lambda b: (b, 0, 0)),      # mask col view
            pl.BlockSpec((D, D), lambda b: (0, 0)),             # Wq
            pl.BlockSpec((1, D), lambda b: (0, 0)),             # bq
            pl.BlockSpec((D, D), lambda b: (0, 0)),             # Wk
            pl.BlockSpec((1, D), lambda b: (0, 0)),             # bk
            pl.BlockSpec((D, D), lambda b: (0, 0)),             # Wv
            pl.BlockSpec((1, D), lambda b: (0, 0)),             # bv
            pl.BlockSpec((D, D), lambda b: (0, 0)),             # Wo
            pl.BlockSpec((1, D), lambda b: (0, 0)),             # bo
        ],
        out_specs=(
            pl.BlockSpec((1, Sq, D), lambda b: (b, 0, 0)),
            pl.BlockSpec((1, heads, Sq, Sk), lambda b: (b, 0, 0, 0)),
        ),
        compiler_params=pltpu.CompilerParams(
            dimension_semantics=("parallel",)),
    )(q, k, v, mask_row, mask_col,
      params["wq"], b1d(params["bq"]),
      params["wk"], b1d(params["bk"]),
      params["wv"], b1d(params["bv"]),
      params["wo"], b1d(params["bo"]))
    # TODO(synk): nn.Dropout on the attention scores is identity in eval mode;
    # training-mode dropout is not implemented.
    return out, scores


# ----------------------------------- main ------------------------------------

if __name__ == "__main__":
    B, S, d_model, heads = 2, 8, 32, 4

    key = jax.random.PRNGKey(0)
    k_params, k_q, k_kv = jax.random.split(key, 3)

    def lin_init(k, fan_in, fan_out):
        kw, kb = jax.random.split(k)
        w = jax.random.normal(kw, (fan_in, fan_out), jnp.float32) * 0.05
        b = jax.random.normal(kb, (fan_out,), jnp.float32) * 0.05
        return w, b

    ks = jax.random.split(k_params, 4)
    wq, bq = lin_init(ks[0], d_model, d_model)
    wk, bk = lin_init(ks[1], d_model, d_model)
    wv, bv = lin_init(ks[2], d_model, d_model)
    wo, bo = lin_init(ks[3], d_model, d_model)
    params = dict(wq=wq, bq=bq, wk=wk, bk=bk, wv=wv, bv=bv, wo=wo, bo=bo)

    x_q = jax.random.normal(k_q, (B, S, d_model), jnp.float32)
    x_kv = jax.random.normal(k_kv, (B, S, d_model), jnp.float32)

    # (B, S) mask: 1 = keep, 0 = masked (a couple of padded positions)
    mask = (jnp.ones((B, S), jnp.float32)
            .at[0, -2:].set(0.0)
            .at[1, -1].set(0.0))

    out, scores = multi_head_attention(params, x_q, x_kv, x_kv, mask,
                                       heads=heads)
    out = jax.block_until_ready(out)
    scores = jax.block_until_ready(scores)

    assert out.shape == (B, S, d_model)
    assert scores.shape == (B, heads, S, S)
    assert bool(jnp.all(jnp.isfinite(out)))
    assert bool(jnp.all(jnp.isfinite(scores)))
    print("KERNEL_OK")
</pallas_src>

<mosaic_0001>
module attributes {stable_mosaic.version = 11 : i64} {
  func.func @_mha_kernel(%arg0: i32, %arg1: memref<1x8x32xf32, #tpu.memory_space<vmem>>, %arg2: memref<1x8x32xf32, #tpu.memory_space<vmem>>, %arg3: memref<1x8x32xf32, #tpu.memory_space<vmem>>, %arg4: memref<1x1x8xf32, #tpu.memory_space<vmem>>, %arg5: memref<1x8x1xf32, #tpu.memory_space<vmem>>, %arg6: memref<32x32xf32, #tpu.memory_space<vmem>>, %arg7: memref<1x32xf32, #tpu.memory_space<vmem>>, %arg8: memref<32x32xf32, #tpu.memory_space<vmem>>, %arg9: memref<1x32xf32, #tpu.memory_space<vmem>>, %arg10: memref<32x32xf32, #tpu.memory_space<vmem>>, %arg11: memref<1x32xf32, #tpu.memory_space<vmem>>, %arg12: memref<32x32xf32, #tpu.memory_space<vmem>>, %arg13: memref<1x32xf32, #tpu.memory_space<vmem>>, %arg14: memref<1x8x32xf32, #tpu.memory_space<vmem>>, %arg15: memref<1x4x8x8xf32, #tpu.memory_space<vmem>>) attributes {dimension_semantics = [#tpu.dimension_semantics<parallel>], iteration_bounds = array<i64: 2>, scalar_prefetch = 0 : i64, scratch_operands = 0 : i64, tpu.core_type = #tpu.core_type<tc>, window_params = [{transform_indices = @transform_0, window_bounds = array<i64: 1, 8, 32>}, {transform_indices = @transform_1, window_bounds = array<i64: 1, 8, 32>}, {transform_indices = @transform_2, window_bounds = array<i64: 1, 8, 32>}, {transform_indices = @transform_3, window_bounds = array<i64: 1, 1, 8>}, {transform_indices = @transform_4, window_bounds = array<i64: 1, 8, 1>}, {pipeline_mode = #tpu.pipeline_mode<synchronous>, transform_indices = @transform_5, window_bounds = array<i64: 32, 32>}, {pipeline_mode = #tpu.pipeline_mode<synchronous>, transform_indices = @transform_6, window_bounds = array<i64: 1, 32>}, {pipeline_mode = #tpu.pipeline_mode<synchronous>, transform_indices = @transform_7, window_bounds = array<i64: 32, 32>}, {pipeline_mode = #tpu.pipeline_mode<synchronous>, transform_indices = @transform_8, window_bounds = array<i64: 1, 32>}, {pipeline_mode = #tpu.pipeline_mode<synchronous>, transform_indices = @transform_9, window_bounds = array<i64: 32, 32>}, {pipeline_mode = #tpu.pipeline_mode<synchronous>, transform_indices = @transform_10, window_bounds = array<i64: 1, 32>}, {pipeline_mode = #tpu.pipeline_mode<synchronous>, transform_indices = @transform_11, window_bounds = array<i64: 32, 32>}, {pipeline_mode = #tpu.pipeline_mode<synchronous>, transform_indices = @transform_12, window_bounds = array<i64: 1, 32>}, {transform_indices = @transform_13, window_bounds = array<i64: 1, 8, 32>}, {transform_indices = @transform_14, window_bounds = array<i64: 1, 4, 8, 8>}]} {
    %c0 = arith.constant 0 : index
    %c0_0 = arith.constant 0 : index
    %c0_1 = arith.constant 0 : index
    %0 = vector.load %arg1[%c0, %c0_0, %c0_1] : memref<1x8x32xf32, #tpu.memory_space<vmem>>, vector<1x8x32xf32>
    %1 = vector.shape_cast %0 : vector<1x8x32xf32> to vector<8x32xf32>
    %c0_2 = arith.constant 0 : index
    %c0_3 = arith.constant 0 : index
    %c0_4 = arith.constant 0 : index
    %2 = vector.load %arg2[%c0_2, %c0_3, %c0_4] : memref<1x8x32xf32, #tpu.memory_space<vmem>>, vector<1x8x32xf32>
    %3 = vector.shape_cast %2 : vector<1x8x32xf32> to vector<8x32xf32>
    %c0_5 = arith.constant 0 : index
    %c0_6 = arith.constant 0 : index
    %c0_7 = arith.constant 0 : index
    %4 = vector.load %arg3[%c0_5, %c0_6, %c0_7] : memref<1x8x32xf32, #tpu.memory_space<vmem>>, vector<1x8x32xf32>
    %5 = vector.shape_cast %4 : vector<1x8x32xf32> to vector<8x32xf32>
    %c0_8 = arith.constant 0 : index
    %c0_9 = arith.constant 0 : index
    %6 = vector.load %arg6[%c0_8, %c0_9] : memref<32x32xf32, #tpu.memory_space<vmem>>, vector<32x32xf32>
    %cst = arith.constant dense<0.000000e+00> : vector<8x32xf32>
    %7 = tpu.matmul %1, %6, %cst {dimension_numbers = #tpu.dot_dimension_numbers<[1], [0], [0], [1], [0, 0, 1, 1], [], []>} : vector<8x32xf32>, vector<32x32xf32>, vector<8x32xf32> -> vector<8x32xf32>
    %c0_10 = arith.constant 0 : index
    %c0_11 = arith.constant 0 : index
    %8 = vector.load %arg7[%c0_10, %c0_11] : memref<1x32xf32, #tpu.memory_space<vmem>>, vector<1x32xf32>
    %9 = vector.broadcast %8 : vector<1x32xf32> to vector<8x32xf32>
    %10 = arith.addf %7, %9 : vector<8x32xf32>
    %c0_12 = arith.constant 0 : index
    %c0_13 = arith.constant 0 : index
    %11 = vector.load %arg8[%c0_12, %c0_13] : memref<32x32xf32, #tpu.memory_space<vmem>>, vector<32x32xf32>
    %cst_14 = arith.constant dense<0.000000e+00> : vector<8x32xf32>
    %12 = tpu.matmul %3, %11, %cst_14 {dimension_numbers = #tpu.dot_dimension_numbers<[1], [0], [0], [1], [0, 0, 1, 1], [], []>} : vector<8x32xf32>, vector<32x32xf32>, vector<8x32xf32> -> vector<8x32xf32>
    %c0_15 = arith.constant 0 : index
    %c0_16 = arith.constant 0 : index
    %13 = vector.load %arg9[%c0_15, %c0_16] : memref<1x32xf32, #tpu.memory_space<vmem>>, vector<1x32xf32>
    %14 = vector.broadcast %13 : vector<1x32xf32> to vector<8x32xf32>
    %15 = arith.addf %12, %14 : vector<8x32xf32>
    %c0_17 = arith.constant 0 : index
    %c0_18 = arith.constant 0 : index
    %16 = vector.load %arg10[%c0_17, %c0_18] : memref<32x32xf32, #tpu.memory_space<vmem>>, vector<32x32xf32>
    %cst_19 = arith.constant dense<0.000000e+00> : vector<8x32xf32>
    %17 = tpu.matmul %5, %16, %cst_19 {dimension_numbers = #tpu.dot_dimension_numbers<[1], [0], [0], [1], [0, 0, 1, 1], [], []>} : vector<8x32xf32>, vector<32x32xf32>, vector<8x32xf32> -> vector<8x32xf32>
    %c0_20 = arith.constant 0 : index
    %c0_21 = arith.constant 0 : index
    %18 = vector.load %arg11[%c0_20, %c0_21] : memref<1x32xf32, #tpu.memory_space<vmem>>, vector<1x32xf32>
    %19 = vector.broadcast %18 : vector<1x32xf32> to vector<8x32xf32>
    %20 = arith.addf %17, %19 : vector<8x32xf32>
    %c0_22 = arith.constant 0 : index
    %c0_23 = arith.constant 0 : index
    %c0_24 = arith.constant 0 : index
    %21 = vector.load %arg4[%c0_22, %c0_23, %c0_24] : memref<1x1x8xf32, #tpu.memory_space<vmem>>, vector<1x1x8xf32>
    %22 = vector.shape_cast %21 : vector<1x1x8xf32> to vector<1x8xf32>
    %c0_25 = arith.constant 0 : index
    %c0_26 = arith.constant 0 : index
    %c0_27 = arith.constant 0 : index
    %23 = vector.load %arg5[%c0_25, %c0_26, %c0_27] : memref<1x8x1xf32, #tpu.memory_space<vmem>>, vector<1x8x1xf32>
    %24 = vector.shape_cast %23 : vector<1x8x1xf32> to vector<8x1xf32>
    %25 = vector.broadcast %24 : vector<8x1xf32> to vector<8x8xf32>
    %26 = vector.broadcast %22 : vector<1x8xf32> to vector<8x8xf32>
    %27 = arith.mulf %25, %26 : vector<8x8xf32>
    %cst_28 = arith.constant 0.000000e+00 : f32
    %28 = vector.broadcast %cst_28 : f32 to vector<8x32xf32>
    %c0_29 = arith.constant 0 : index
    %c0_30 = arith.constant 0 : index
    %29 = vector.load %arg13[%c0_29, %c0_30] : memref<1x32xf32, #tpu.memory_space<vmem>>, vector<1x32xf32>
    %30 = vector.broadcast %29 : vector<1x32xf32> to vector<8x32xf32>
    %31 = arith.addf %28, %30 : vector<8x32xf32>
    %32 = vector.extract_strided_slice %10 {offsets = [0, 0], sizes = [8, 8], strides = [1, 1]} : vector<8x32xf32> to vector<8x8xf32>
    %33 = vector.extract_strided_slice %15 {offsets = [0, 0], sizes = [8, 8], strides = [1, 1]} : vector<8x32xf32> to vector<8x8xf32>
    %34 = vector.extract_strided_slice %20 {offsets = [0, 0], sizes = [8, 8], strides = [1, 1]} : vector<8x32xf32> to vector<8x8xf32>
    %cst_31 = arith.constant dense<0.000000e+00> : vector<8x8xf32>
    %35 = tpu.matmul %32, %33, %cst_31 {dimension_numbers = #tpu.dot_dimension_numbers<[1], [1], [0], [0], [0, 0, 1, 0], [], []>} : vector<8x8xf32>, vector<8x8xf32>, vector<8x8xf32> -> vector<8x8xf32>
    %cst_32 = arith.constant 0.353553385 : f32
    %36 = vector.broadcast %cst_32 : f32 to vector<8x8xf32>
    %37 = arith.mulf %35, %36 : vector<8x8xf32>
    %cst_33 = arith.constant 0.000000e+00 : f32
    %38 = vector.broadcast %cst_33 : f32 to vector<8x8xf32>
    %39 = arith.cmpf oeq, %27, %38 : vector<8x8xf32>
    %cst_34 = arith.constant -1.000000e+09 : f32
    %40 = vector.broadcast %cst_34 : f32 to vector<8x8xf32>
    %41 = arith.select %39, %40, %37 : vector<8x8xi1>, vector<8x8xf32>
    %cst_35 = arith.constant dense<0xFF800000> : vector<8xf32>
    %42 = vector.multi_reduction <maximumf>, %41, %cst_35 [1] : vector<8x8xf32> to vector<8xf32>
    %43 = vector.shape_cast %42 : vector<8xf32> to vector<8x1xf32>
    %44 = vector.broadcast %43 : vector<8x1xf32> to vector<8x8xf32>
    %45 = arith.subf %41, %44 : vector<8x8xf32>
    %46 = math.exp %45 : vector<8x8xf32>
    %cst_36 = arith.constant dense<0.000000e+00> : vector<8xf32>
    %47 = vector.multi_reduction <add>, %46, %cst_36 [1] : vector<8x8xf32> to vector<8xf32>
    %48 = vector.shape_cast %47 : vector<8xf32> to vector<8x1xf32>
    %49 = tpu.reciprocal %48 {approx = true} : vector<8x1xf32> -> vector<8x1xf32>
    %50 = vector.broadcast %49 : vector<8x1xf32> to vector<8x8xf32>
    %51 = arith.mulf %46, %50 : vector<8x8xf32>
    %c0_37 = arith.constant 0 : index
    %c0_38 = arith.constant 0 : index
    %c0_39 = arith.constant 0 : index
    %c0_40 = arith.constant 0 : index
    %52 = vector.load %arg15[%c0_37, %c0_38, %c0_39, %c0_40] : memref<1x4x8x8xf32, #tpu.memory_space<vmem>>, vector<1x1x8x8xf32>
    %53 = vector.shape_cast %52 : vector<1x1x8x8xf32> to vector<8x8xf32>
    %54 = vector.shape_cast %51 : vector<8x8xf32> to vector<1x1x8x8xf32>
    tpu.vector_store %arg15[%c0_37, %c0_38, %c0_39, %c0_40], %54 {strides = array<i32>} : memref<1x4x8x8xf32, #tpu.memory_space<vmem>>, vector<1x1x8x8xf32>,
    %cst_41 = arith.constant dense<0.000000e+00> : vector<8x8xf32>
    %55 = tpu.matmul %51, %34, %cst_41 {dimension_numbers = #tpu.dot_dimension_numbers<[1], [0], [0], [1], [0, 0, 1, 1], [], []>} : vector<8x8xf32>, vector<8x8xf32>, vector<8x8xf32> -> vector<8x8xf32>
    %c0_42 = arith.constant 0 : index
    %c0_43 = arith.constant 0 : index
    %56 = vector.load %arg12[%c0_42, %c0_43] : memref<32x32xf32, #tpu.memory_space<vmem>>, vector<8x32xf32>
    %cst_44 = arith.constant dense<0.000000e+00> : vector<8x32xf32>
    %57 = tpu.matmul %55, %56, %cst_44 {dimension_numbers = #tpu.dot_dimension_numbers<[1], [0], [0], [1], [0, 0, 1, 1], [], []>} : vector<8x8xf32>, vector<8x32xf32>, vector<8x32xf32> -> vector<8x32xf32>
    %58 = arith.addf %31, %57 : vector<8x32xf32>
    %59 = vector.extract_strided_slice %10 {offsets = [0, 8], sizes = [8, 8], strides = [1, 1]} : vector<8x32xf32> to vector<8x8xf32>
    %60 = vector.extract_strided_slice %15 {offsets = [0, 8], sizes = [8, 8], strides = [1, 1]} : vector<8x32xf32> to vector<8x8xf32>
    %61 = vector.extract_strided_slice %20 {offsets = [0, 8], sizes = [8, 8], strides = [1, 1]} : vector<8x32xf32> to vector<8x8xf32>
    %cst_45 = arith.constant dense<0.000000e+00> : vector<8x8xf32>
    %62 = tpu.matmul %59, %60, %cst_45 {dimension_numbers = #tpu.dot_dimension_numbers<[1], [1], [0], [0], [0, 0, 1, 0], [], []>} : vector<8x8xf32>, vector<8x8xf32>, vector<8x8xf32> -> vector<8x8xf32>
    %cst_46 = arith.constant 0.353553385 : f32
    %63 = vector.broadcast %cst_46 : f32 to vector<8x8xf32>
    %64 = arith.mulf %62, %63 : vector<8x8xf32>
    %cst_47 = arith.constant 0.000000e+00 : f32
    %65 = vector.broadcast %cst_47 : f32 to vector<8x8xf32>
    %66 = arith.cmpf oeq, %27, %65 : vector<8x8xf32>
    %cst_48 = arith.constant -1.000000e+09 : f32
    %67 = vector.broadcast %cst_48 : f32 to vector<8x8xf32>
    %68 = arith.select %66, %67, %64 : vector<8x8xi1>, vector<8x8xf32>
    %cst_49 = arith.constant dense<0xFF800000> : vector<8xf32>
    %69 = vector.multi_reduction <maximumf>, %68, %cst_49 [1] : vector<8x8xf32> to vector<8xf32>
    %70 = vector.shape_cast %69 : vector<8xf32> to vector<8x1xf32>
    %71 = vector.broadcast %70 : vector<8x1xf32> to vector<8x8xf32>
    %72 = arith.subf %68, %71 : vector<8x8xf32>
    %73 = math.exp %72 : vector<8x8xf32>
    %cst_50 = arith.constant dense<0.000000e+00> : vector<8xf32>
    %74 = vector.multi_reduction <add>, %73, %cst_50 [1] : vector<8x8xf32> to vector<8xf32>
    %75 = vector.shape_cast %74 : vector<8xf32> to vector<8x1xf32>
    %76 = tpu.reciprocal %75 {approx = true} : vector<8x1xf32> -> vector<8x1xf32>
    %77 = vector.broadcast %76 : vector<8x1xf32> to vector<8x8xf32>
    %78 = arith.mulf %73, %77 : vector<8x8xf32>
    %c0_51 = arith.constant 0 : index
    %c1 = arith.constant 1 : index
    %c0_52 = arith.constant 0 : index
    %c0_53 = arith.constant 0 : index
    %79 = vector.load %arg15[%c0_51, %c1, %c0_52, %c0_53] : memref<1x4x8x8xf32, #tpu.memory_space<vmem>>, vector<1x1x8x8xf32>
    %80 = vector.shape_cast %79 : vector<1x1x8x8xf32> to vector<8x8xf32>
    %81 = vector.shape_cast %78 : vector<8x8xf32> to vector<1x1x8x8xf32>
    tpu.vector_store %arg15[%c0_51, %c1, %c0_52, %c0_53], %81 {strides = array<i32>} : memref<1x4x8x8xf32, #tpu.memory_space<vmem>>, vector<1x1x8x8xf32>,
    %cst_54 = arith.constant dense<0.000000e+00> : vector<8x8xf32>
    %82 = tpu.matmul %78, %61, %cst_54 {dimension_numbers = #tpu.dot_dimension_numbers<[1], [0], [0], [1], [0, 0, 1, 1], [], []>} : vector<8x8xf32>, vector<8x8xf32>, vector<8x8xf32> -> vector<8x8xf32>
    %c8 = arith.constant 8 : index
    %c0_55 = arith.constant 0 : index
    %83 = vector.load %arg12[%c8, %c0_55] : memref<32x32xf32, #tpu.memory_space<vmem>>, vector<8x32xf32>
    %cst_56 = arith.constant dense<0.000000e+00> : vector<8x32xf32>
    %84 = tpu.matmul %82, %83, %cst_56 {dimension_numbers = #tpu.dot_dimension_numbers<[1], [0], [0], [1], [0, 0, 1, 1], [], []>} : vector<8x8xf32>, vector<8x32xf32>, vector<8x32xf32> -> vector<8x32xf32>
    %85 = arith.addf %58, %84 : vector<8x32xf32>
    %86 = vector.extract_strided_slice %10 {offsets = [0, 16], sizes = [8, 8], strides = [1, 1]} : vector<8x32xf32> to vector<8x8xf32>
    %87 = vector.extract_strided_slice %15 {offsets = [0, 16], sizes = [8, 8], strides = [1, 1]} : vector<8x32xf32> to vector<8x8xf32>
    %88 = vector.extract_strided_slice %20 {offsets = [0, 16], sizes = [8, 8], strides = [1, 1]} : vector<8x32xf32> to vector<8x8xf32>
    %cst_57 = arith.constant dense<0.000000e+00> : vector<8x8xf32>
    %89 = tpu.matmul %86, %87, %cst_57 {dimension_numbers = #tpu.dot_dimension_numbers<[1], [1], [0], [0], [0, 0, 1, 0], [], []>} : vector<8x8xf32>, vector<8x8xf32>, vector<8x8xf32> -> vector<8x8xf32>
    %cst_58 = arith.constant 0.353553385 : f32
    %90 = vector.broadcast %cst_58 : f32 to vector<8x8xf32>
    %91 = arith.mulf %89, %90 : vector<8x8xf32>
    %cst_59 = arith.constant 0.000000e+00 : f32
    %92 = vector.broadcast %cst_59 : f32 to vector<8x8xf32>
    %93 = arith.cmpf oeq, %27, %92 : vector<8x8xf32>
    %cst_60 = arith.constant -1.000000e+09 : f32
    %94 = vector.broadcast %cst_60 : f32 to vector<8x8xf32>
    %95 = arith.select %93, %94, %91 : vector<8x8xi1>, vector<8x8xf32>
    %cst_61 = arith.constant dense<0xFF800000> : vector<8xf32>
    %96 = vector.multi_reduction <maximumf>, %95, %cst_61 [1] : vector<8x8xf32> to vector<8xf32>
    %97 = vector.shape_cast %96 : vector<8xf32> to vector<8x1xf32>
    %98 = vector.broadcast %97 : vector<8x1xf32> to vector<8x8xf32>
    %99 = arith.subf %95, %98 : vector<8x8xf32>
    %100 = math.exp %99 : vector<8x8xf32>
    %cst_62 = arith.constant dense<0.000000e+00> : vector<8xf32>
    %101 = vector.multi_reduction <add>, %100, %cst_62 [1] : vector<8x8xf32> to vector<8xf32>
    %102 = vector.shape_cast %101 : vector<8xf32> to vector<8x1xf32>
    %103 = tpu.reciprocal %102 {approx = true} : vector<8x1xf32> -> vector<8x1xf32>
    %104 = vector.broadcast %103 : vector<8x1xf32> to vector<8x8xf32>
    %105 = arith.mulf %100, %104 : vector<8x8xf32>
    %c0_63 = arith.constant 0 : index
    %c2 = arith.constant 2 : index
    %c0_64 = arith.constant 0 : index
    %c0_65 = arith.constant 0 : index
    %106 = vector.load %arg15[%c0_63, %c2, %c0_64, %c0_65] : memref<1x4x8x8xf32, #tpu.memory_space<vmem>>, vector<1x1x8x8xf32>
    %107 = vector.shape_cast %106 : vector<1x1x8x8xf32> to vector<8x8xf32>
    %108 = vector.shape_cast %105 : vector<8x8xf32> to vector<1x1x8x8xf32>
    tpu.vector_store %arg15[%c0_63, %c2, %c0_64, %c0_65], %108 {strides = array<i32>} : memref<1x4x8x8xf32, #tpu.memory_space<vmem>>, vector<1x1x8x8xf32>,
    %cst_66 = arith.constant dense<0.000000e+00> : vector<8x8xf32>
    %109 = tpu.matmul %105, %88, %cst_66 {dimension_numbers = #tpu.dot_dimension_numbers<[1], [0], [0], [1], [0, 0, 1, 1], [], []>} : vector<8x8xf32>, vector<8x8xf32>, vector<8x8xf32> -> vector<8x8xf32>
    %c16 = arith.constant 16 : index
    %c0_67 = arith.constant 0 : index
    %110 = vector.load %arg12[%c16, %c0_67] : memref<32x32xf32, #tpu.memory_space<vmem>>, vector<8x32xf32>
    %cst_68 = arith.constant dense<0.000000e+00> : vector<8x32xf32>
    %111 = tpu.matmul %109, %110, %cst_68 {dimension_numbers = #tpu.dot_dimension_numbers<[1], [0], [0], [1], [0, 0, 1, 1], [], []>} : vector<8x8xf32>, vector<8x32xf32>, vector<8x32xf32> -> vector<8x32xf32>
    %112 = arith.addf %85, %111 : vector<8x32xf32>
    %113 = vector.extract_strided_slice %10 {offsets = [0, 24], sizes = [8, 8], strides = [1, 1]} : vector<8x32xf32> to vector<8x8xf32>
    %114 = vector.extract_strided_slice %15 {offsets = [0, 24], sizes = [8, 8], strides = [1, 1]} : vector<8x32xf32> to vector<8x8xf32>
    %115 = vector.extract_strided_slice %20 {offsets = [0, 24], sizes = [8, 8], strides = [1, 1]} : vector<8x32xf32> to vector<8x8xf32>
    %cst_69 = arith.constant dense<0.000000e+00> : vector<8x8xf32>
    %116 = tpu.matmul %113, %114, %cst_69 {dimension_numbers = #tpu.dot_dimension_numbers<[1], [1], [0], [0], [0, 0, 1, 0], [], []>} : vector<8x8xf32>, vector<8x8xf32>, vector<8x8xf32> -> vector<8x8xf32>
    %cst_70 = arith.constant 0.353553385 : f32
    %117 = vector.broadcast %cst_70 : f32 to vector<8x8xf32>
    %118 = arith.mulf %116, %117 : vector<8x8xf32>
    %cst_71 = arith.constant 0.000000e+00 : f32
    %119 = vector.broadcast %cst_71 : f32 to vector<8x8xf32>
    %120 = arith.cmpf oeq, %27, %119 : vector<8x8xf32>
    %cst_72 = arith.constant -1.000000e+09 : f32
    %121 = vector.broadcast %cst_72 : f32 to vector<8x8xf32>
    %122 = arith.select %120, %121, %118 : vector<8x8xi1>, vector<8x8xf32>
    %cst_73 = arith.constant dense<0xFF800000> : vector<8xf32>
    %123 = vector.multi_reduction <maximumf>, %122, %cst_73 [1] : vector<8x8xf32> to vector<8xf32>
    %124 = vector.shape_cast %123 : vector<8xf32> to vector<8x1xf32>
    %125 = vector.broadcast %124 : vector<8x1xf32> to vector<8x8xf32>
    %126 = arith.subf %122, %125 : vector<8x8xf32>
    %127 = math.exp %126 : vector<8x8xf32>
    %cst_74 = arith.constant dense<0.000000e+00> : vector<8xf32>
    %128 = vector.multi_reduction <add>, %127, %cst_74 [1] : vector<8x8xf32> to vector<8xf32>
    %129 = vector.shape_cast %128 : vector<8xf32> to vector<8x1xf32>
    %130 = tpu.reciprocal %129 {approx = true} : vector<8x1xf32> -> vector<8x1xf32>
    %131 = vector.broadcast %130 : vector<8x1xf32> to vector<8x8xf32>
    %132 = arith.mulf %127, %131 : vector<8x8xf32>
    %c0_75 = arith.constant 0 : index
    %c3 = arith.constant 3 : index
    %c0_76 = arith.constant 0 : index
    %c0_77 = arith.constant 0 : index
    %133 = vector.load %arg15[%c0_75, %c3, %c0_76, %c0_77] : memref<1x4x8x8xf32, #tpu.memory_space<vmem>>, vector<1x1x8x8xf32>
    %134 = vector.shape_cast %133 : vector<1x1x8x8xf32> to vector<8x8xf32>
    %135 = vector.shape_cast %132 : vector<8x8xf32> to vector<1x1x8x8xf32>
    tpu.vector_store %arg15[%c0_75, %c3, %c0_76, %c0_77], %135 {strides = array<i32>} : memref<1x4x8x8xf32, #tpu.memory_space<vmem>>, vector<1x1x8x8xf32>,
    %cst_78 = arith.constant dense<0.000000e+00> : vector<8x8xf32>
    %136 = tpu.matmul %132, %115, %cst_78 {dimension_numbers = #tpu.dot_dimension_numbers<[1], [0], [0], [1], [0, 0, 1, 1], [], []>} : vector<8x8xf32>, vector<8x8xf32>, vector<8x8xf32> -> vector<8x8xf32>
    %c24 = arith.constant 24 : index
    %c0_79 = arith.constant 0 : index
    %137 = vector.load %arg12[%c24, %c0_79] : memref<32x32xf32, #tpu.memory_space<vmem>>, vector<8x32xf32>
    %cst_80 = arith.constant dense<0.000000e+00> : vector<8x32xf32>
    %138 = tpu.matmul %136, %137, %cst_80 {dimension_numbers = #tpu.dot_dimension_numbers<[1], [0], [0], [1], [0, 0, 1, 1], [], []>} : vector<8x8xf32>, vector<8x32xf32>, vector<8x32xf32> -> vector<8x32xf32>
    %139 = arith.addf %112, %138 : vector<8x32xf32>
    %c0_81 = arith.constant 0 : index
    %c0_82 = arith.constant 0 : index
    %c0_83 = arith.constant 0 : index
    %140 = vector.load %arg14[%c0_81, %c0_82, %c0_83] : memref<1x8x32xf32, #tpu.memory_space<vmem>>, vector<1x8x32xf32>
    %141 = vector.shape_cast %140 : vector<1x8x32xf32> to vector<8x32xf32>
    %142 = vector.shape_cast %139 : vector<8x32xf32> to vector<1x8x32xf32>
    tpu.vector_store %arg14[%c0_81, %c0_82, %c0_83], %142 {strides = array<i32>} : memref<1x8x32xf32, #tpu.memory_space<vmem>>, vector<1x8x32xf32>,
    return
  }
  func.func @transform_0(%arg0: i32) -> (i32, i32, i32) {
    %c0_i32 = arith.constant 0 : i32
    %c0_i32_0 = arith.constant 0 : i32
    %c0_i32_1 = arith.constant 0 : i32
    return %arg0, %c0_i32, %c0_i32_0 : i32, i32, i32
  }
  func.func @transform_1(%arg0: i32) -> (i32, i32, i32) {
    %c0_i32 = arith.constant 0 : i32
    %c0_i32_0 = arith.constant 0 : i32
    %c0_i32_1 = arith.constant 0 : i32
    return %arg0, %c0_i32, %c0_i32_0 : i32, i32, i32
  }
  func.func @transform_2(%arg0: i32) -> (i32, i32, i32) {
    %c0_i32 = arith.constant 0 : i32
    %c0_i32_0 = arith.constant 0 : i32
    %c0_i32_1 = arith.constant 0 : i32
    return %arg0, %c0_i32, %c0_i32_0 : i32, i32, i32
  }
  func.func @transform_3(%arg0: i32) -> (i32, i32, i32) {
    %c0_i32 = arith.constant 0 : i32
    %c0_i32_0 = arith.constant 0 : i32
    %c0_i32_1 = arith.constant 0 : i32
    return %arg0, %c0_i32, %c0_i32_0 : i32, i32, i32
  }
  func.func @transform_4(%arg0: i32) -> (i32, i32, i32) {
    %c0_i32 = arith.constant 0 : i32
    %c0_i32_0 = arith.constant 0 : i32
    %c0_i32_1 = arith.constant 0 : i32
    return %arg0, %c0_i32, %c0_i32_0 : i32, i32, i32
  }
  func.func @transform_5(%arg0: i32) -> (i32, i32) {
    %c0_i32 = arith.constant 0 : i32
    %c0_i32_0 = arith.constant 0 : i32
    %c0_i32_1 = arith.constant 0 : i32
    return %c0_i32, %c0_i32_0 : i32, i32
  }
  func.func @transform_6(%arg0: i32) -> (i32, i32) {
    %c0_i32 = arith.constant 0 : i32
    %c0_i32_0 = arith.constant 0 : i32
    %c0_i32_1 = arith.constant 0 : i32
    return %c0_i32, %c0_i32_0 : i32, i32
  }
  func.func @transform_7(%arg0: i32) -> (i32, i32) {
    %c0_i32 = arith.constant 0 : i32
    %c0_i32_0 = arith.constant 0 : i32
    %c0_i32_1 = arith.constant 0 : i32
    return %c0_i32, %c0_i32_0 : i32, i32
  }
  func.func @transform_8(%arg0: i32) -> (i32, i32) {
    %c0_i32 = arith.constant 0 : i32
    %c0_i32_0 = arith.constant 0 : i32
    %c0_i32_1 = arith.constant 0 : i32
    return %c0_i32, %c0_i32_0 : i32, i32
  }
  func.func @transform_9(%arg0: i32) -> (i32, i32) {
    %c0_i32 = arith.constant 0 : i32
    %c0_i32_0 = arith.constant 0 : i32
    %c0_i32_1 = arith.constant 0 : i32
    return %c0_i32, %c0_i32_0 : i32, i32
  }
  func.func @transform_10(%arg0: i32) -> (i32, i32) {
    %c0_i32 = arith.constant 0 : i32
    %c0_i32_0 = arith.constant 0 : i32
    %c0_i32_1 = arith.constant 0 : i32
    return %c0_i32, %c0_i32_0 : i32, i32
  }
  func.func @transform_11(%arg0: i32) -> (i32, i32) {
    %c0_i32 = arith.constant 0 : i32
    %c0_i32_0 = arith.constant 0 : i32
    %c0_i32_1 = arith.constant 0 : i32
    return %c0_i32, %c0_i32_0 : i32, i32
  }
  func.func @transform_12(%arg0: i32) -> (i32, i32) {
    %c0_i32 = arith.constant 0 : i32
    %c0_i32_0 = arith.constant 0 : i32
    %c0_i32_1 = arith.constant 0 : i32
    return %c0_i32, %c0_i32_0 : i32, i32
  }
  func.func @transform_13(%arg0: i32) -> (i32, i32, i32) {
    %c0_i32 = arith.constant 0 : i32
    %c0_i32_0 = arith.constant 0 : i32
    %c0_i32_1 = arith.constant 0 : i32
    return %arg0, %c0_i32, %c0_i32_0 : i32, i32, i32
  }
  func.func @transform_14(%arg0: i32) -> (i32, i32, i32, i32) {
    %c0_i32 = arith.constant 0 : i32
    %c0_i32_0 = arith.constant 0 : i32
    %c0_i32_1 = arith.constant 0 : i32
    %c0_i32_2 = arith.constant 0 : i32
    return %arg0, %c0_i32, %c0_i32_0, %c0_i32_1 : i32, i32, i32, i32
  }
}

</mosaic_0001>

<llo_original>
// kernel: tpu_custom_call.1
$region0: #{tpu_custom_call.1}
  #allocation0 [shape = 'u32[]', space=smem, size = 0x4, offset = 0x4, fixed_abs, tag = 'smem constant byte address 0x4 - core index']
  #allocation1 [shape = 'u32[72,128]{1,0:T(1,128)}', space=vmem, size = 0x9000, scoped, tag = 'internal scratch']
  %s0 = inlined_call_operand.vmem [shape: f32[2,8,32], index: 0, kind: input, shape index: {}]
  %s1 = inlined_call_operand.hbm [shape: f32[2,8,32], index: 1, kind: input, shape index: {}]
  %s2 = inlined_call_operand.hbm [shape: f32[2,8,32], index: 2, kind: input, shape index: {}]
  %s3 = inlined_call_operand.vmem [shape: f32[2,1,8], index: 3, kind: input, shape index: {}]
  %s4 = inlined_call_operand.vmem [shape: f32[2,8,1], index: 4, kind: input, shape index: {}]
  %s5 = inlined_call_operand.hbm [shape: f32[32,32], index: 5, kind: input, shape index: {}]
  %s6 = inlined_call_operand.vmem [shape: f32[1,32], index: 6, kind: input, shape index: {}]
  %s7 = inlined_call_operand.hbm [shape: f32[32,32], index: 7, kind: input, shape index: {}]
  %s8 = inlined_call_operand.vmem [shape: f32[1,32], index: 8, kind: input, shape index: {}]
  %s9 = inlined_call_operand.hbm [shape: f32[32,32], index: 9, kind: input, shape index: {}]
  %s10 = inlined_call_operand.vmem [shape: f32[1,32], index: 10, kind: input, shape index: {}]
  %s11 = inlined_call_operand.hbm [shape: f32[32,32], index: 11, kind: input, shape index: {}]
  %s12 = inlined_call_operand.vmem [shape: f32[1,32], index: 12, kind: input, shape index: {}]
  %s13 = inlined_call_operand.hbm [shape: f32[2,8,32], index: 13, kind: output, shape index: {0}]
  %s14 = inlined_call_operand.hbm [shape: f32[2,4,8,8], index: 14, kind: output, shape index: {1}]
  %15 = xla_tuple %s13, %s14
  %s16 = sld [smem:[#allocation0]]
  $region117: #{tpu_custom_call.1} parent=0
    _
  %s18 = ssub.s32 1, %s16
  %s19 = scalar_select 0, %s18, %s16
  $region1: #{tpu_custom_call.1} parent=0
    #allocation2 [shape = 'u8[8192]{0}', space=vmem, size = 0x2000, scoped, tag = 'input window, operand 1']
    #allocation3 [shape = 's32[2]{0}', space=sflag, size = 0x8, scoped, tag = 'scoped memory for tpu_custom_call.1']
    #allocation4 [shape = 's32[2]{0}', space=sflag, size = 0x8, scoped, tag = 'scoped memory for tpu_custom_call.1']
    #allocation5 [shape = 'u8[8192]{0}', space=vmem, size = 0x2000, scoped, tag = 'input window, operand 2']
    #allocation6 [shape = 's32[2]{0}', space=sflag, size = 0x8, scoped, tag = 'scoped memory for tpu_custom_call.1']
    #allocation7 [shape = 'u8[16384]{0}', space=vmem, size = 0x4000, scoped, tag = 'input window, operand 5, single buffered']
    #allocation8 [shape = 'u8[16384]{0}', space=vmem, size = 0x4000, scoped, tag = 'input window, operand 7, single buffered']
    #allocation9 [shape = 's32[1]{0}', space=sflag, size = 0x4, scoped, tag = 'scoped memory for tpu_custom_call.1']
    #allocation10 [shape = 'u8[16384]{0}', space=vmem, size = 0x4000, scoped, tag = 'input window, operand 9, single buffered']
    #allocation11 [shape = 'u8[16384]{0}', space=vmem, size = 0x4000, scoped, tag = 'input window, operand 11, single buffered']
    #allocation12 [shape = 's32[1]{0}', space=sflag, size = 0x4, scoped, tag = 'scoped memory for tpu_custom_call.1']
    #allocation13 [shape = 'u8[8192]{0}', space=vmem, size = 0x2000, scoped, tag = 'output window, operand 0']
    #allocation14 [shape = 'u8[32768]{0}', space=vmem, size = 0x8000, scoped, tag = 'output window, operand 1']
    #allocation15 [shape = 's32[2]{0}', space=sflag, size = 0x8, scoped, tag = 'scoped memory for tpu_custom_call.1']
    %20 = vsyncpa [#allocation3], 0
    %s21 = scalar_lea.sflag [#allocation3], 1
    %22 = vsyncpa %s21, 0
    %23 = vsyncpa [#allocation6], 0
    %s24 = scalar_lea.sflag [#allocation6], 1
    %25 = vsyncpa %s24, 0
    %26 = vsyncpa [#allocation9], 0
    %27 = vsyncpa [#allocation12], 0
    %28 = vsyncpa [#allocation4], 0
    %s29 = scalar_lea.sflag [#allocation4], 1
    %30 = vsyncpa %s29, 0
    %31 = vsyncpa [#allocation15], 0
    %s32 = scalar_lea.sflag [#allocation15], 1
    %33 = vsyncpa %s32, 0
    loop: start=0, step=1, limit=4
    $region2: #{tpu_custom_call.1} parent=1 // loop_pre_header
      _
    $region3: #{tpu_custom_call.1} parent=1 // loop_header
      %s35 = sphi 0, %s39
      %p36 = scmp.ge.s32.totalorder %s35, 4
      %s45 = sphi 0, %s47
      %s48 = sphi 0, %s45
      %s49 = sphi 0, %s48
      %s65 = sphi 0, %s49
      %s71 = sphi 0, %s73
      %s74 = sphi 0, %s71
      %s75 = sphi 0, %s74
      %s91 = sphi 0, %s75
      %s97 = sphi 0, %s99
      %s100 = sphi 0, %s97
      %s101 = sphi 0, %s100
      %s117 = sphi 0, %s101
      %s123 = sphi 0, %s125
      %s126 = sphi 0, %s123
      %s127 = sphi 0, %s126
      %s143 = sphi 0, %s127
      %s149 = sphi 0, %s151
      %s152 = sphi 0, %s149
      %s153 = sphi 0, %s152
      %s169 = sphi 0, %s153
      %s173 = sphi 0, %s173
      %s175 = sphi 0, %s173
      %s176 = sphi 0, %s175
      %s190 = sphi 0, %s176
      %s194 = sphi 0, %s194
      %s196 = sphi 0, %s194
      %s197 = sphi 0, %s196
      %s211 = sphi 0, %s197
      %s215 = sphi 0, %s215
      %s217 = sphi 0, %s215
      %s218 = sphi 0, %s217
      %s232 = sphi 0, %s218
      %s236 = sphi 0, %s236
      %s238 = sphi 0, %s236
      %s239 = sphi 0, %s238
      %s253 = sphi 0, %s239
      %s257 = sphi 0, %s257
      %s259 = sphi 0, %s257
      %s260 = sphi 0, %s259
      %s274 = sphi 0, %s260
      %s278 = sphi 0, %s278
      %s280 = sphi 0, %s278
      %s281 = sphi 0, %s280
      %s295 = sphi 0, %s281
      %s299 = sphi 0, %s299
      %s301 = sphi 0, %s299
      %s302 = sphi 0, %s301
      %s316 = sphi 0, %s302
      %s320 = sphi 0, %s320
      %s322 = sphi 0, %s320
      %s323 = sphi 0, %s322
      %s337 = sphi 0, %s323
      %s343 = sphi 0, %s345
      %s346 = sphi 0, %s343
      %s347 = sphi 0, %s346
      %s363 = sphi 0, %s347
      %s369 = sphi 0, %s371
      %s372 = sphi 0, %s369
      %s373 = sphi 0, %s372
      %s389 = sphi 0, %s373
    $region4: #{tpu_custom_call.1} parent=1 // loop_header_branch
      %38 = sbr.rel (%p36) target = $region8
    $region5: #{tpu_custom_call.1} parent=1 // loop_body
      %s40 = ssub.s32 %s35, 1
      %s41 = ssub.s32 %s35, 2
      %s42 = sadd.s32 %s35, 1
      %s43 = ssub.s32 %s35, %s42
      %p44 = scmp.eq.s32.totalorder %s43, 0
      %s46 = sadd.s32 %s45, 1
      %s47 = scalar_select %p44, %s45, %s46
      %p50 = pneg %p44
      %p51 = scmp.eq.s32.totalorder %s35, 1
      %p52 = por %p50, %p51
      %p53 = scmp.ne.s32.totalorder %s45, %s48
      %p54 = scmp.eq.s32.totalorder %s35, 0
      %p55 = por %p53, %p54
      %p56 = scmp.ne.s32.totalorder %s45, %s48
      %p57 = scmp.eq.s32.totalorder %s40, 1
      %p58 = por %p56, %p57
      %p59 = scmp.ne.s32.totalorder %s48, %s49
      %p60 = scmp.eq.s32.totalorder %s40, 0
      %p61 = por %p59, %p60
      %p62 = scmp.ne.s32.totalorder %s48, %s49
      %p63 = scmp.eq.s32.totalorder %s41, 1
      %p64 = por %p62, %p63
      %p66 = scmp.ne.s32.totalorder %s49, %s65
      %p67 = scmp.eq.s32.totalorder %s41, 0
      %p68 = por %p66, %p67
      %s69 = ssub.s32 %s35, %s42
      %p70 = scmp.eq.s32.totalorder %s69, 0
      %s72 = sadd.s32 %s71, 1
      %s73 = scalar_select %p70, %s71, %s72
      %p76 = pneg %p70
      %p77 = scmp.eq.s32.totalorder %s35, 1
      %p78 = por %p76, %p77
      %p79 = scmp.ne.s32.totalorder %s71, %s74
      %p80 = scmp.eq.s32.totalorder %s35, 0
      %p81 = por %p79, %p80
      %p82 = scmp.ne.s32.totalorder %s71, %s74
      %p83 = scmp.eq.s32.totalorder %s40, 1
      %p84 = por %p82, %p83
      %p85 = scmp.ne.s32.totalorder %s74, %s75
      %p86 = scmp.eq.s32.totalorder %s40, 0
      %p87 = por %p85, %p86
      %p88 = scmp.ne.s32.totalorder %s74, %s75
      %p89 = scmp.eq.s32.totalorder %s41, 1
      %p90 = por %p88, %p89
      %p92 = scmp.ne.s32.totalorder %s75, %s91
      %p93 = scmp.eq.s32.totalorder %s41, 0
      %p94 = por %p92, %p93
      %s95 = ssub.s32 %s35, %s42
      %p96 = scmp.eq.s32.totalorder %s95, 0
      %s98 = sadd.s32 %s97, 1
      %s99 = scalar_select %p96, %s97, %s98
      %p102 = pneg %p96
      %p103 = scmp.eq.s32.totalorder %s35, 1
      %p104 = por %p102, %p103
      %p105 = scmp.ne.s32.totalorder %s97, %s100
      %p106 = scmp.eq.s32.totalorder %s35, 0
      %p107 = por %p105, %p106
      %p108 = scmp.ne.s32.totalorder %s97, %s100
      %p109 = scmp.eq.s32.totalorder %s40, 1
      %p110 = por %p108, %p109
      %p111 = scmp.ne.s32.totalorder %s100, %s101
      %p112 = scmp.eq.s32.totalorder %s40, 0
      %p113 = por %p111, %p112
      %p114 = scmp.ne.s32.totalorder %s100, %s101
      %p115 = scmp.eq.s32.totalorder %s41, 1
      %p116 = por %p114, %p115
      %p118 = scmp.ne.s32.totalorder %s101, %s117
      %p119 = scmp.eq.s32.totalorder %s41, 0
      %p120 = por %p118, %p119
      %s121 = ssub.s32 %s35, %s42
      %p122 = scmp.eq.s32.totalorder %s121, 0
      %s124 = sadd.s32 %s123, 1
      %s125 = scalar_select %p122, %s123, %s124
      %p128 = pneg %p122
      %p129 = scmp.eq.s32.totalorder %s35, 1
      %p130 = por %p128, %p129
      %p131 = scmp.ne.s32.totalorder %s123, %s126
      %p132 = scmp.eq.s32.totalorder %s35, 0
      %p133 = por %p131, %p132
      %p134 = scmp.ne.s32.totalorder %s123, %s126
      %p135 = scmp.eq.s32.totalorder %s40, 1
      %p136 = por %p134, %p135
      %p137 = scmp.ne.s32.totalorder %s126, %s127
      %p138 = scmp.eq.s32.totalorder %s40, 0
      %p139 = por %p137, %p138
      %p140 = scmp.ne.s32.totalorder %s126, %s127
      %p141 = scmp.eq.s32.totalorder %s41, 1
      %p142 = por %p140, %p141
      %p144 = scmp.ne.s32.totalorder %s127, %s143
      %p145 = scmp.eq.s32.totalorder %s41, 0
      %p146 = por %p144, %p145
      %s147 = ssub.s32 %s35, %s42
      %p148 = scmp.eq.s32.totalorder %s147, 0
      %s150 = sadd.s32 %s149, 1
      %s151 = scalar_select %p148, %s149, %s150
      %p154 = pneg %p148
      %p155 = scmp.eq.s32.totalorder %s35, 1
      %p156 = por %p154, %p155
      %p157 = scmp.ne.s32.totalorder %s149, %s152
      %p158 = scmp.eq.s32.totalorder %s35, 0
      %p159 = por %p157, %p158
      %p160 = scmp.ne.s32.totalorder %s149, %s152
      %p161 = scmp.eq.s32.totalorder %s40, 1
      %p162 = por %p160, %p161
      %p163 = scmp.ne.s32.totalorder %s152, %s153
      %p164 = scmp.eq.s32.totalorder %s40, 0
      %p165 = por %p163, %p164
      %p166 = scmp.ne.s32.totalorder %s152, %s153
      %p167 = scmp.eq.s32.totalorder %s41, 1
      %p168 = por %p166, %p167
      %p170 = scmp.ne.s32.totalorder %s153, %s169
      %p171 = scmp.eq.s32.totalorder %s41, 0
      %p172 = por %p170, %p171
      %s174 = sadd.s32 %s173, 1
      %p177 = scmp.eq.s32.totalorder %s35, 1
      %p178 = scmp.ne.s32.totalorder %s173, %s175
      %p179 = scmp.eq.s32.totalorder %s35, 0
      %p180 = por %p178, %p179
      %p181 = scmp.ne.s32.totalorder %s173, %s175
      %p182 = scmp.eq.s32.totalorder %s40, 1
      %p183 = por %p181, %p182
      %p184 = scmp.ne.s32.totalorder %s175, %s176
      %p185 = scmp.eq.s32.totalorder %s40, 0
      %p186 = por %p184, %p185
      %p187 = scmp.ne.s32.totalorder %s175, %s176
      %p188 = scmp.eq.s32.totalorder %s41, 1
      %p189 = por %p187, %p188
      %p191 = scmp.ne.s32.totalorder %s176, %s190
      %p192 = scmp.eq.s32.totalorder %s41, 0
      %p193 = por %p191, %p192
      %s195 = sadd.s32 %s194, 1
      %p198 = scmp.eq.s32.totalorder %s35, 1
      %p199 = scmp.ne.s32.totalorder %s194, %s196
      %p200 = scmp.eq.s32.totalorder %s35, 0
      %p201 = por %p199, %p200
      %p202 = scmp.ne.s32.totalorder %s194, %s196
      %p203 = scmp.eq.s32.totalorder %s40, 1
      %p204 = por %p202, %p203
      %p205 = scmp.ne.s32.totalorder %s196, %s197
      %p206 = scmp.eq.s32.totalorder %s40, 0
      %p207 = por %p205, %p206
      %p208 = scmp.ne.s32.totalorder %s196, %s197
      %p209 = scmp.eq.s32.totalorder %s41, 1
      %p210 = por %p208, %p209
      %p212 = scmp.ne.s32.totalorder %s197, %s211
      %p213 = scmp.eq.s32.totalorder %s41, 0
      %p214 = por %p212, %p213
      %s216 = sadd.s32 %s215, 1
      %p219 = scmp.eq.s32.totalorder %s35, 1
      %p220 = scmp.ne.s32.totalorder %s215, %s217
      %p221 = scmp.eq.s32.totalorder %s35, 0
      %p222 = por %p220, %p221
      %p223 = scmp.ne.s32.totalorder %s215, %s217
      %p224 = scmp.eq.s32.totalorder %s40, 1
      %p225 = por %p223, %p224
      %p226 = scmp.ne.s32.totalorder %s217, %s218
      %p227 = scmp.eq.s32.totalorder %s40, 0
      %p228 = por %p226, %p227
      %p229 = scmp.ne.s32.totalorder %s217, %s218
      %p230 = scmp.eq.s32.totalorder %s41, 1
      %p231 = por %p229, %p230
      %p233 = scmp.ne.s32.totalorder %s218, %s232
      %p234 = scmp.eq.s32.totalorder %s41, 0
      %p235 = por %p233, %p234
      %s237 = sadd.s32 %s236, 1
      %p240 = scmp.eq.s32.totalorder %s35, 1
      %p241 = scmp.ne.s32.totalorder %s236, %s238
      %p242 = scmp.eq.s32.totalorder %s35, 0
      %p243 = por %p241, %p242
      %p244 = scmp.ne.s32.totalorder %s236, %s238
      %p245 = scmp.eq.s32.totalorder %s40, 1
      %p246 = por %p244, %p245
      %p247 = scmp.ne.s32.totalorder %s238, %s239
      %p248 = scmp.eq.s32.totalorder %s40, 0
      %p249 = por %p247, %p248
      %p250 = scmp.ne.s32.totalorder %s238, %s239
      %p251 = scmp.eq.s32.totalorder %s41, 1
      %p252 = por %p250, %p251
      %p254 = scmp.ne.s32.totalorder %s239, %s253
      %p255 = scmp.eq.s32.totalorder %s41, 0
      %p256 = por %p254, %p255
      %s258 = sadd.s32 %s257, 1
      %p261 = scmp.eq.s32.totalorder %s35, 1
      %p262 = scmp.ne.s32.totalorder %s257, %s259
      %p263 = scmp.eq.s32.totalorder %s35, 0
      %p264 = por %p262, %p263
      %p265 = scmp.ne.s32.totalorder %s257, %s259
      %p266 = scmp.eq.s32.totalorder %s40, 1
      %p267 = por %p265, %p266
      %p268 = scmp.ne.s32.totalorder %s259, %s260
      %p269 = scmp.eq.s32.totalorder %s40, 0
      %p270 = por %p268, %p269
      %p271 = scmp.ne.s32.totalorder %s259, %s260
      %p272 = scmp.eq.s32.totalorder %s41, 1
      %p273 = por %p271, %p272
      %p275 = scmp.ne.s32.totalorder %s260, %s274
      %p276 = scmp.eq.s32.totalorder %s41, 0
      %p277 = por %p275, %p276
      %s279 = sadd.s32 %s278, 1
      %p282 = scmp.eq.s32.totalorder %s35, 1
      %p283 = scmp.ne.s32.totalorder %s278, %s280
      %p284 = scmp.eq.s32.totalorder %s35, 0
      %p285 = por %p283, %p284
      %p286 = scmp.ne.s32.totalorder %s278, %s280
      %p287 = scmp.eq.s32.totalorder %s40, 1
      %p288 = por %p286, %p287
      %p289 = scmp.ne.s32.totalorder %s280, %s281
      %p290 = scmp.eq.s32.totalorder %s40, 0
      %p291 = por %p289, %p290
      %p292 = scmp.ne.s32.totalorder %s280, %s281
      %p293 = scmp.eq.s32.totalorder %s41, 1
      %p294 = por %p292, %p293
      %p296 = scmp.ne.s32.totalorder %s281, %s295
      %p297 = scmp.eq.s32.totalorder %s41, 0
      %p298 = por %p296, %p297
      %s300 = sadd.s32 %s299, 1
      %p303 = scmp.eq.s32.totalorder %s35, 1
      %p304 = scmp.ne.s32.totalorder %s299, %s301
      %p305 = scmp.eq.s32.totalorder %s35, 0
      %p306 = por %p304, %p305
      %p307 = scmp.ne.s32.totalorder %s299, %s301
      %p308 = scmp.eq.s32.totalorder %s40, 1
      %p309 = por %p307, %p308
      %p310 = scmp.ne.s32.totalorder %s301, %s302
      %p311 = scmp.eq.s32.totalorder %s40, 0
      %p312 = por %p310, %p311
      %p313 = scmp.ne.s32.totalorder %s301, %s302
      %p314 = scmp.eq.s32.totalorder %s41, 1
      %p315 = por %p313, %p314
      %p317 = scmp.ne.s32.totalorder %s302, %s316
      %p318 = scmp.eq.s32.totalorder %s41, 0
      %p319 = por %p317, %p318
      %s321 = sadd.s32 %s320, 1
      %p324 = scmp.eq.s32.totalorder %s35, 1
      %p325 = scmp.ne.s32.totalorder %s320, %s322
      %p326 = scmp.eq.s32.totalorder %s35, 0
      %p327 = por %p325, %p326
      %p328 = scmp.ne.s32.totalorder %s320, %s322
      %p329 = scmp.eq.s32.totalorder %s40, 1
      %p330 = por %p328, %p329
      %p331 = scmp.ne.s32.totalorder %s322, %s323
      %p332 = scmp.eq.s32.totalorder %s40, 0
      %p333 = por %p331, %p332
      %p334 = scmp.ne.s32.totalorder %s322, %s323
      %p335 = scmp.eq.s32.totalorder %s41, 1
      %p336 = por %p334, %p335
      %p338 = scmp.ne.s32.totalorder %s323, %s337
      %p339 = scmp.eq.s32.totalorder %s41, 0
      %p340 = por %p338, %p339
      %s341 = ssub.s32 %s35, %s42
      %p342 = scmp.eq.s32.totalorder %s341, 0
      %s344 = sadd.s32 %s343, 1
      %s345 = scalar_select %p342, %s343, %s344
      %p348 = pneg %p342
      %p349 = scmp.eq.s32.totalorder %s35, 1
      %p350 = por %p348, %p349
      %p351 = scmp.ne.s32.totalorder %s343, %s346
      %p352 = scmp.eq.s32.totalorder %s35, 0
      %p353 = por %p351, %p352
      %p354 = scmp.ne.s32.totalorder %s343, %s346
      %p355 = scmp.eq.s32.totalorder %s40, 1
      %p356 = por %p354, %p355
      %p357 = scmp.ne.s32.totalorder %s346, %s347
      %p358 = scmp.eq.s32.totalorder %s40, 0
      %p359 = por %p357, %p358
      %p360 = scmp.ne.s32.totalorder %s346, %s347
      %p361 = scmp.eq.s32.totalorder %s41, 1
      %p362 = por %p360, %p361
      %p364 = scmp.ne.s32.totalorder %s347, %s363
      %p365 = scmp.eq.s32.totalorder %s41, 0
      %p366 = por %p364, %p365
      %s367 = ssub.s32 %s35, %s42
      %p368 = scmp.eq.s32.totalorder %s367, 0
      %s370 = sadd.s32 %s369, 1
      %s371 = scalar_select %p368, %s369, %s370
      %p374 = pneg %p368
      %p375 = scmp.eq.s32.totalorder %s35, 1
      %p376 = por %p374, %p375
      %p377 = scmp.ne.s32.totalorder %s369, %s372
      %p378 = scmp.eq.s32.totalorder %s35, 0
      %p379 = por %p377, %p378
      %p380 = scmp.ne.s32.totalorder %s369, %s372
      %p381 = scmp.eq.s32.totalorder %s40, 1
      %p382 = por %p380, %p381
      %p383 = scmp.ne.s32.totalorder %s372, %s373
      %p384 = scmp.eq.s32.totalorder %s40, 0
      %p385 = por %p383, %p384
      %p386 = scmp.ne.s32.totalorder %s372, %s373
      %p387 = scmp.eq.s32.totalorder %s41, 1
      %p388 = por %p386, %p387
      %p390 = scmp.ne.s32.totalorder %s373, %s389
      %p391 = scmp.eq.s32.totalorder %s41, 0
      %p392 = por %p390, %p391
      %p393 = scmp.le.s32.totalorder 1, %s35
      %p394 = scmp.lt.s32.totalorder %s35, 3
      %p395 = pnand %p393, %p394
      %p396 = pneg %p395
      // Predicated region
      $region9: #{tpu_custom_call.1} parent=5 // pred_check
        _
      $region10: #{tpu_custom_call.1} parent=5 // pred_check_branch
        %398 = sbr.rel (%p395) target = $region12
      $region11: #{tpu_custom_call.1} parent=5 // pred_region
        %s399 = ssub.s32 %s35, 1
        // Predicated region
        $region13: #{tpu_custom_call.1} parent=11 // pred_check
          %p400 = pneg %p186
        $region14: #{tpu_custom_call.1} parent=11 // pred_check_branch
          %402 = sbr.rel (%p400) target = $region16
        $region15: #{tpu_custom_call.1} parent=11 // pred_region
          %404 = vsyncadd [#allocation6], 0
          %s405 = sshll.u32 %s5, 4
          %s406 = int_to_ptr.hbm [resolvable:$true] %s405
          %s407 = sshll.u32 [#allocation7], 4
          %s408 = int_to_ptr.vmem [resolvable:$true] %s407
          %413 = dma.hbm_to_vmem [thread:$0]  %s406, 512, %s408, [#allocation6], 128, 128, 8
        $region16: #{tpu_custom_call.1} parent=11 // pred_fallthru
          _
        // Predicated region
        $region17: #{tpu_custom_call.1} parent=11 // pred_check
          %p414 = pneg %p207
        $region18: #{tpu_custom_call.1} parent=11 // pred_check_branch
          %416 = sbr.rel (%p414) target = $region20
        $region19: #{tpu_custom_call.1} parent=11 // pred_region
          _
        $region20: #{tpu_custom_call.1} parent=11 // pred_fallthru
          _
        // Predicated region
        $region21: #{tpu_custom_call.1} parent=11 // pred_check
          %p417 = pneg %p228
        $region22: #{tpu_custom_call.1} parent=11 // pred_check_branch
          %419 = sbr.rel (%p417) target = $region24
        $region23: #{tpu_custom_call.1} parent=11 // pred_region
          %421 = vsyncadd [#allocation9], 0
          %s422 = sshll.u32 %s7, 4
          %s423 = int_to_ptr.hbm [resolvable:$true] %s422
          %s424 = sshll.u32 [#allocation8], 4
          %s425 = int_to_ptr.vmem [resolvable:$true] %s424
          %430 = dma.hbm_to_vmem [thread:$0]  %s423, 512, %s425, [#allocation9], 128, 128, 8
        $region24: #{tpu_custom_call.1} parent=11 // pred_fallthru
          _
        // Predicated region
        $region25: #{tpu_custom_call.1} parent=11 // pred_check
          %p431 = pneg %p249
        $region26: #{tpu_custom_call.1} parent=11 // pred_check_branch
          %433 = sbr.rel (%p431) target = $region28
        $region27: #{tpu_custom_call.1} parent=11 // pred_region
          _
        $region28: #{tpu_custom_call.1} parent=11 // pred_fallthru
          _
        // Predicated region
        $region29: #{tpu_custom_call.1} parent=11 // pred_check
          %p434 = pneg %p270
        $region30: #{tpu_custom_call.1} parent=11 // pred_check_branch
          %436 = sbr.rel (%p434) target = $region32
        $region31: #{tpu_custom_call.1} parent=11 // pred_region
          %438 = vsyncadd [#allocation9], 0
          %s439 = sshll.u32 %s9, 4
          %s440 = int_to_ptr.hbm [resolvable:$true] %s439
          %s441 = sshll.u32 [#allocation10], 4
          %s442 = int_to_ptr.vmem [resolvable:$true] %s441
          %447 = dma.hbm_to_vmem [thread:$0]  %s440, 512, %s442, [#allocation9], 128, 128, 8
        $region32: #{tpu_custom_call.1} parent=11 // pred_fallthru
          _
        // Predicated region
        $region33: #{tpu_custom_call.1} parent=11 // pred_check
          %p448 = pneg %p291
        $region34: #{tpu_custom_call.1} parent=11 // pred_check_branch
          %450 = sbr.rel (%p448) target = $region36
        $region35: #{tpu_custom_call.1} parent=11 // pred_region
          _
        $region36: #{tpu_custom_call.1} parent=11 // pred_fallthru
          _
        // Predicated region
        $region37: #{tpu_custom_call.1} parent=11 // pred_check
          %p451 = pneg %p312
        $region38: #{tpu_custom_call.1} parent=11 // pred_check_branch
          %453 = sbr.rel (%p451) target = $region40
        $region39: #{tpu_custom_call.1} parent=11 // pred_region
          %455 = vsyncadd [#allocation12], 0
          %s456 = sshll.u32 %s11, 4
          %s457 = int_to_ptr.hbm [resolvable:$true] %s456
          %s458 = sshll.u32 [#allocation11], 4
          %s459 = int_to_ptr.vmem [resolvable:$true] %s458
          %464 = dma.hbm_to_vmem [thread:$0]  %s457, 512, %s459, [#allocation12], 128, 128, 8
        $region40: #{tpu_custom_call.1} parent=11 // pred_fallthru
          _
        // Predicated region
        $region41: #{tpu_custom_call.1} parent=11 // pred_check
          %p465 = pneg %p333
        $region42: #{tpu_custom_call.1} parent=11 // pred_check_branch
          %467 = sbr.rel (%p465) target = $region44
        $region43: #{tpu_custom_call.1} parent=11 // pred_region
          _
        $region44: #{tpu_custom_call.1} parent=11 // pred_fallthru
          _
      $region12: #{tpu_custom_call.1} parent=5 // pred_fallthru
        _
      %p468 = scmp.lt.s32.totalorder %s35, 2
      // Predicated region
      $region45: #{tpu_custom_call.1} parent=5 // pred_check
        %p469 = pneg %p468
      $region46: #{tpu_custom_call.1} parent=5 // pred_check_branch
        %471 = sbr.rel (%p469) target = $region48
      $region47: #{tpu_custom_call.1} parent=5 // pred_region
        // Predicated region
        $region49: #{tpu_custom_call.1} parent=47 // pred_check
          %p472 = pneg %p55
        $region50: #{tpu_custom_call.1} parent=47 // pred_check_branch
          %474 = sbr.rel (%p472) target = $region52
        $region51: #{tpu_custom_call.1} parent=47 // pred_region
          %p475 = scmp.lt.s32.totalorder %s35, 1
          %s476 = scalar_select %p475, %s35, 1
          %s477 = smul.addr %s476, 8
          %s478 = scalar_lea.vmem %s0, %s477
        $region52: #{tpu_custom_call.1} parent=47 // pred_fallthru
          _
        // Predicated region
        $region53: #{tpu_custom_call.1} parent=47 // pred_check
          %p479 = pneg %p81
        $region54: #{tpu_custom_call.1} parent=47 // pred_check_branch
          %481 = sbr.rel (%p479) target = $region56
        $region55: #{tpu_custom_call.1} parent=47 // pred_region
          %s482 = sand.u32 %s71, 1
          %s483 = scalar_lea.sflag [#allocation3], %s482
          %s484 = sand.u32 %s71, 1
          %s485 = smul.addr %s484, 8
          %s486 = scalar_lea.vmem [#allocation2], %s485
          %488 = vsyncadd %s483, 0
          %s489 = smul.addr %s35, 8
          %s490 = scalar_lea.hbm %s1, %s489
          %s492 = sshll.u32 %s490, 4
          %s493 = int_to_ptr.hbm [resolvable:$true] %s492
          %s494 = sshll.u32 %s486, 4
          %s495 = int_to_ptr.vmem [resolvable:$true] %s494
          %497 = dma.hbm_to_vmem [thread:$0]  %s493, 128, %s495, %s483
        $region56: #{tpu_custom_call.1} parent=47 // pred_fallthru
          _
        // Predicated region
        $region57: #{tpu_custom_call.1} parent=47 // pred_check
          %p498 = pneg %p107
        $region58: #{tpu_custom_call.1} parent=47 // pred_check_branch
          %500 = sbr.rel (%p498) target = $region60
        $region59: #{tpu_custom_call.1} parent=47 // pred_region
          %s501 = sand.u32 %s35, 1
          %s502 = scalar_lea.sflag [#allocation6], %s501
          %s503 = sand.u32 %s97, 1
          %s504 = smul.addr %s503, 8
          %s505 = scalar_lea.vmem [#allocation5], %s504
          %507 = vsyncadd %s502, 0
          %s508 = smul.addr %s35, 8
          %s509 = scalar_lea.hbm %s2, %s508
          %s511 = sshll.u32 %s509, 4
          %s512 = int_to_ptr.hbm [resolvable:$true] %s511
          %s513 = sshll.u32 %s505, 4
          %s514 = int_to_ptr.vmem [resolvable:$true] %s513
          %516 = dma.hbm_to_vmem [thread:$0]  %s512, 128, %s514, %s502
        $region60: #{tpu_custom_call.1} parent=47 // pred_fallthru
          _
        // Predicated region
        $region61: #{tpu_custom_call.1} parent=47 // pred_check
          %p517 = pneg %p133
        $region62: #{tpu_custom_call.1} parent=47 // pred_check_branch
          %519 = sbr.rel (%p517) target = $region64
        $region63: #{tpu_custom_call.1} parent=47 // pred_region
          %p520 = scmp.lt.s32.totalorder %s35, 1
          %s521 = scalar_select %p520, %s35, 1
          %s522 = scalar_lea.vmem %s3, %s521
        $region64: #{tpu_custom_call.1} parent=47 // pred_fallthru
          _
        // Predicated region
        $region65: #{tpu_custom_call.1} parent=47 // pred_check
          %p523 = pneg %p159
        $region66: #{tpu_custom_call.1} parent=47 // pred_check_branch
          %525 = sbr.rel (%p523) target = $region68
        $region67: #{tpu_custom_call.1} parent=47 // pred_region
          %p526 = scmp.lt.s32.totalorder %s35, 1
          %s527 = scalar_select %p526, %s35, 1
          %s528 = smul.addr %s527, 8
          %s529 = scalar_lea.vmem %s4, %s528
        $region68: #{tpu_custom_call.1} parent=47 // pred_fallthru
          _
      $region48: #{tpu_custom_call.1} parent=5 // pred_fallthru
        _
      %p530 = scmp.le.s32.totalorder 1, %s35
      %p531 = scmp.lt.s32.totalorder %s35, 3
      %p532 = pnand %p530, %p531
      %p533 = pneg %p532
      // Predicated region
      $region69: #{tpu_custom_call.1} parent=5 // pred_check
        _
      $region70: #{tpu_custom_call.1} parent=5 // pred_check_branch
        %535 = sbr.rel (%p532) target = $region72
      $region71: #{tpu_custom_call.1} parent=5 // pred_region
        %s536 = ssub.s32 %s35, 1
        %s537 = sand.u32 %s74, 1
        %s538 = scalar_lea.sflag [#allocation3], %s537
        %s539 = sand.u32 %s74, 1
        %s540 = smul.addr %s539, 8
        %s541 = scalar_lea.vmem [#allocation2], %s540
        // Predicated region
        $region73: #{tpu_custom_call.1} parent=71 // pred_check
          %p542 = pneg %p87
        $region74: #{tpu_custom_call.1} parent=71 // pred_check_branch
          %544 = sbr.rel (%p542) target = $region76
        $region75: #{tpu_custom_call.1} parent=71 // pred_region
          %546 = dma.done %s538, 128
        $region76: #{tpu_custom_call.1} parent=71 // pred_fallthru
          _
        %s547 = sand.u32 %s40, 1
        %s548 = scalar_lea.sflag [#allocation6], %s547
        %s549 = sand.u32 %s100, 1
        %s550 = smul.addr %s549, 8
        %s551 = scalar_lea.vmem [#allocation5], %s550
        // Predicated region
        $region77: #{tpu_custom_call.1} parent=71 // pred_check
          %p552 = pneg %p113
        $region78: #{tpu_custom_call.1} parent=71 // pred_check_branch
          %554 = sbr.rel (%p552) target = $region80
        $region79: #{tpu_custom_call.1} parent=71 // pred_region
          %556 = dma.done %s548, 128
        $region80: #{tpu_custom_call.1} parent=71 // pred_fallthru
          _
        // Predicated region
        $region81: #{tpu_custom_call.1} parent=71 // pred_check
          %p557 = pneg %p186
        $region82: #{tpu_custom_call.1} parent=71 // pred_check_branch
          %559 = sbr.rel (%p557) target = $region84
        $region83: #{tpu_custom_call.1} parent=71 // pred_region
          %561 = dma.done [#allocation6], 512
        $region84: #{tpu_custom_call.1} parent=71 // pred_fallthru
          _
        // Predicated region
        $region85: #{tpu_custom_call.1} parent=71 // pred_check
          %p562 = pneg %p228
        $region86: #{tpu_custom_call.1} parent=71 // pred_check_branch
          %564 = sbr.rel (%p562) target = $region88
        $region87: #{tpu_custom_call.1} parent=71 // pred_region
          %566 = dma.done [#allocation9], 512
        $region88: #{tpu_custom_call.1} parent=71 // pred_fallthru
          _
        // Predicated region
        $region89: #{tpu_custom_call.1} parent=71 // pred_check
          %p567 = pneg %p270
        $region90: #{tpu_custom_call.1} parent=71 // pred_check_branch
          %569 = sbr.rel (%p567) target = $region92
        $region91: #{tpu_custom_call.1} parent=71 // pred_region
          %571 = dma.done [#allocation9], 512
        $region92: #{tpu_custom_call.1} parent=71 // pred_fallthru
          _
        // Predicated region
        $region93: #{tpu_custom_call.1} parent=71 // pred_check
          %p572 = pneg %p312
        $region94: #{tpu_custom_call.1} parent=71 // pred_check_branch
          %574 = sbr.rel (%p572) target = $region96
        $region95: #{tpu_custom_call.1} parent=71 // pred_region
          %576 = dma.done [#allocation12], 512
        $region96: #{tpu_custom_call.1} parent=71 // pred_fallthru
          _
        %p577 = scmp.lt.s32.totalorder %s40, 1
        %s578 = scalar_select %p577, %s40, 1
        %s579 = smul.addr %s578, 8
        %s580 = scalar_lea.vmem %s0, %s579
        %p581 = pneg %p61
        %p582 = pneg %p58
        %s583 = sand.u32 %s74, 1
        %s584 = scalar_lea.sflag [#allocation3], %s583
        %s585 = sand.u32 %s74, 1
        %s586 = smul.addr %s585, 8
        %s587 = scalar_lea.vmem [#allocation2], %s586
        %p588 = pneg %p87
        %p589 = pneg %p84
        %s590 = sand.u32 %s40, 1
        %s591 = scalar_lea.sflag [#allocation6], %s590
        %s592 = sand.u32 %s100, 1
        %s593 = smul.addr %s592, 8
        %s594 = scalar_lea.vmem [#allocation5], %s593
        %p595 = pneg %p113
        %p596 = pneg %p110
        %p597 = scmp.lt.s32.totalorder %s40, 1
        %s598 = scalar_select %p597, %s40, 1
        %s599 = scalar_lea.vmem %s3, %s598
        %p600 = pneg %p139
        %p601 = pneg %p136
        %p602 = scmp.lt.s32.totalorder %s40, 1
        %s603 = scalar_select %p602, %s40, 1
        %s604 = smul.addr %s603, 8
        %s605 = scalar_lea.vmem %s4, %s604
        %p606 = pneg %p165
        %p607 = pneg %p162
        %p608 = pneg %p186
        %p609 = pneg %p183
        %p610 = pneg %p207
        %p611 = pneg %p204
        %p612 = pneg %p228
        %p613 = pneg %p225
        %p614 = pneg %p249
        %p615 = pneg %p246
        %p616 = pneg %p270
        %p617 = pneg %p267
        %p618 = pneg %p291
        %p619 = pneg %p288
        %p620 = pneg %p312
        %p621 = pneg %p309
        %p622 = pneg %p333
        %p623 = pneg %p330
        %p624 = pneg %p359
        %p625 = pneg %p356
        %s626 = sand.u32 %s346, 1
        %s627 = scalar_lea.sflag [#allocation4], %s626
        %s628 = sand.u32 %s346, 1
        %s629 = smul.addr %s628, 8
        %s630 = scalar_lea.vmem [#allocation13], %s629
        %p631 = pneg %p385
        %p632 = pneg %p382
        %s633 = sand.u32 %s372, 1
        %s634 = scalar_lea.sflag [#allocation15], %s633
        %s635 = sand.u32 %s372, 1
        %s636 = smul.addr %s635, 32
        %s637 = scalar_lea.vmem [#allocation14], %s636
        %p638 = scmp.lt.s32.totalorder %s40, 1
        %s639 = scalar_select %p638, %s40, 1
        %s640 = smul.addr %s639, 8
        %s641 = scalar_lea.vmem %s0, %s640
        %p642 = scmp.lt.s32.totalorder %s40, 1
        %s643 = scalar_select %p642, %s40, 1
        %s644 = scalar_lea.vmem %s3, %s643
        %p645 = scmp.lt.s32.totalorder %s40, 1
        %s646 = scalar_select %p645, %s40, 1
        %s647 = smul.addr %s646, 8
        %s648 = scalar_lea.vmem %s4, %s647
        %v649 = vld [vmem:[%s641] sm:$0xff]
        %v650 = vld [vmem:[%s541] sm:$0xff]
        %v651 = vld [vmem:[%s551] sm:$0xff]
        %v652 = vld [vmem:[#allocation7] sm:$0xff]
        %v653 = vld [vmem:[#allocation7 + $0x8] sm:$0xff]
        %v654 = vld [vmem:[#allocation7 + $0x10] sm:$0xff]
        %v655 = vld [vmem:[#allocation7 + $0x18] sm:$0xff]
        %v656 = vld [vmem:[%s6] sm:$0x1]
        %v658 = vperm.slane %v656, 0
        %vm660 = vcmask 261120
        %v662 = vsel %vm660, %v649, 0
        %664 = vmatpush.msra.mxu0 0.0
        %665 = vmatpush.msra.mxu0 0.0
        %666 = vmatpush.msra.mxu0 0.0
        %667 = vmatpush.msra.mxu0 0.0
        %668 = vmatpush.msra.mxu0 0.0
        %669 = vmatpush.msra.mxu0 0.0
        %670 = vmatpush.msra.mxu0 0.0
        %671 = vmatpush.msra.mxu0 0.0
        %672 = vmatpush.msra.mxu0 0.0
        %673 = vmatpush.msra.mxu0 0.0
        %674 = vmatpush.msra.mxu0 0.0
        %675 = vmatpush.msra.mxu0 0.0
        %676 = vmatpush.msra.mxu0 %v655
        %677 = vmatpush.msra.mxu0 %v654
        %678 = vmatpush.msra.mxu0 %v653
        %679 = vmatpush.msra.mxu0 %v652
        %680 = vmatmul.f32.gmra.mxu0 %v662
        %v681 = vpop.f32.mrf.mxu0
        %v682 = vadd.f32 %v658, %v681
        %683 = vdwg.mxu0
        %v684 = vld [vmem:[#allocation8] sm:$0xff]
        %v685 = vld [vmem:[#allocation8 + $0x8] sm:$0xff]
        %v686 = vld [vmem:[#allocation8 + $0x10] sm:$0xff]
        %v687 = vld [vmem:[#allocation8 + $0x18] sm:$0xff]
        %v688 = vld [vmem:[%s8] sm:$0x1]
        %v690 = vperm.slane %v688, 0
        %v693 = vsel %vm660, %v650, 0
        %695 = vmatpush.msra.mxu0 0.0
        %696 = vmatpush.msra.mxu0 0.0
        %697 = vmatpush.msra.mxu0 0.0
        %698 = vmatpush.msra.mxu0 0.0
        %699 = vmatpush.msra.mxu0 0.0
        %700 = vmatpush.msra.mxu0 0.0
        %701 = vmatpush.msra.mxu0 0.0
        %702 = vmatpush.msra.mxu0 0.0
        %703 = vmatpush.msra.mxu0 0.0
        %704 = vmatpush.msra.mxu0 0.0
        %705 = vmatpush.msra.mxu0 0.0
        %706 = vmatpush.msra.mxu0 0.0
        %707 = vmatpush.msra.mxu0 %v687
        %708 = vmatpush.msra.mxu0 %v686
        %709 = vmatpush.msra.mxu0 %v685
        %710 = vmatpush.msra.mxu0 %v684
        %711 = vmatmul.f32.gmra.mxu0 %v693
        %v712 = vpop.f32.mrf.mxu0
        %v713 = vadd.f32 %v690, %v712
        %714 = vdwg.mxu0
        %v715 = vld [vmem:[#allocation10] sm:$0xff]
        %v716 = vld [vmem:[#allocation10 + $0x8] sm:$0xff]
        %v717 = vld [vmem:[#allocation10 + $0x10] sm:$0xff]
        %v718 = vld [vmem:[#allocation10 + $0x18] sm:$0xff]
        %v719 = vld [vmem:[%s10] sm:$0x1]
        %v721 = vperm.slane %v719, 0
        %v724 = vsel %vm660, %v651, 0
        %726 = vmatpush.msra.mxu0 0.0
        %727 = vmatpush.msra.mxu0 0.0
        %728 = vmatpush.msra.mxu0 0.0
        %729 = vmatpush.msra.mxu0 0.0
        %730 = vmatpush.msra.mxu0 0.0
        %731 = vmatpush.msra.mxu0 0.0
        %732 = vmatpush.msra.mxu0 0.0
        %733 = vmatpush.msra.mxu0 0.0
        %734 = vmatpush.msra.mxu0 0.0
        %735 = vmatpush.msra.mxu0 0.0
        %736 = vmatpush.msra.mxu0 0.0
        %737 = vmatpush.msra.mxu0 0.0
        %738 = vmatpush.msra.mxu0 %v718
        %739 = vmatpush.msra.mxu0 %v717
        %740 = vmatpush.msra.mxu0 %v716
        %741 = vmatpush.msra.mxu0 %v715
        %742 = vmatmul.f32.gmra.mxu0 %v724
        %v743 = vpop.f32.mrf.mxu0
        %v744 = vadd.f32 %v721, %v743
        %745 = vdwg.mxu0
        %v746 = vld [vmem:[%s644] sm:$0x1]
        %v747 = vld [vmem:[%s648] sm:$0xff]
        %749 = vset.pattern.permute.xlu0 0
        %750 = vperm.xlu0 %749, %v747
        %v751 = vpop.permute.xlu0 %750
        %v754 = vperm.slane %v746, 0
        %v756 = vmul.f32 %v751, %v754
        %v757 = vld [vmem:[%s12] sm:$0x1]
        %v759 = vperm.slane %v757, 0
        %v761 = vadd.f32 %v759, 0.0
        %vm762 = vcmask 64512
        %v764 = vsel %vm762, %v682, 0
        %v767 = vsel %vm762, %v713, 0
        %769 = vmatpush.xpose.msra.mxu0 0.0
        %770 = vmatpush.xpose.msra.mxu0 0.0
        %771 = vmatpush.xpose.msra.mxu0 0.0
        %772 = vmatpush.xpose.msra.mxu0 0.0
        %773 = vmatpush.xpose.msra.mxu0 0.0
        %774 = vmatpush.xpose.msra.mxu0 0.0
        %775 = vmatpush.xpose.msra.mxu0 0.0
        %776 = vmatpush.xpose.msra.mxu0 0.0
        %777 = vmatpush.xpose.msra.mxu0 0.0
        %778 = vmatpush.xpose.msra.mxu0 0.0
        %779 = vmatpush.xpose.msra.mxu0 0.0
        %780 = vmatpush.xpose.msra.mxu0 0.0
        %781 = vmatpush.xpose.msra.mxu0 0.0
        %782 = vmatpush.xpose.msra.mxu0 0.0
        %783 = vmatpush.xpose.msra.mxu0 0.0
        %784 = vmatpush.xpose.msra.mxu0 %v767
        %785 = vmatmul.f32.gmra.mxu0 %v764
        %v786 = vpop.f32.mrf.mxu0
        %v787 = vadd.f32 0.0, %v786
        %788 = vdwg.mxu0
        %v789 = vmul.f32 %v787, 0.35355338
        %vm790 = vcmp.eq.f32.partialorder %v756, 0.0
        %v791 = vsel %vm790, -1e+09, %v789
        %v792 = vsel %vm762, %v791, -inf
        %793 = vmax.xlane.f32.xlu0 %v792
        %v794 = vpop.xlane.xlu0 %793
        %v795 = vsub.f32 %v791, %v794
        %v796 = vmul.f32 %v795, 1.442695
        %v797 = vpow.pop %v796
        %v798 = vsel %vm762, %v797, 0.0
        %799 = vadd.xlane.f32.xlu0 %v798
        %v800 = vpop.xlane.xlu0 %799
        %v801 = vrcp.pop %v800
        %v802 = vmul.f32 %v797, %v801
        %803 = vst.msk [vmem:[%s637] sm:$0xff] %vm762, %v802
        %v805 = vsel %vm762, %v802, 0
        %807 = vmatpush.msra.mxu0 0.0
        %808 = vmatpush.msra.mxu0 0.0
        %809 = vmatpush.msra.mxu0 0.0
        %810 = vmatpush.msra.mxu0 0.0
        %811 = vmatpush.msra.mxu0 0.0
        %812 = vmatpush.msra.mxu0 0.0
        %813 = vmatpush.msra.mxu0 0.0
        %814 = vmatpush.msra.mxu0 0.0
        %815 = vmatpush.msra.mxu0 0.0
        %816 = vmatpush.msra.mxu0 0.0
        %817 = vmatpush.msra.mxu0 0.0
        %818 = vmatpush.msra.mxu0 0.0
        %819 = vmatpush.msra.mxu0 0.0
        %820 = vmatpush.msra.mxu0 0.0
        %821 = vmatpush.msra.mxu0 0.0
        %822 = vmatpush.msra.mxu0 %v744
        %823 = vmatmul.f32.gmra.mxu0 %v805
        %v824 = vpop.f32.mrf.mxu0
        %v825 = vadd.f32 0.0, %v824
        %826 = vdwg.mxu0
        %v827 = vld [vmem:[#allocation11] sm:$0xff]
        %v829 = vsel %vm762, %v825, 0
        %831 = vmatpush.msra.mxu0 0.0
        %832 = vmatpush.msra.mxu0 0.0
        %833 = vmatpush.msra.mxu0 0.0
        %834 = vmatpush.msra.mxu0 0.0
        %835 = vmatpush.msra.mxu0 0.0
        %836 = vmatpush.msra.mxu0 0.0
        %837 = vmatpush.msra.mxu0 0.0
        %838 = vmatpush.msra.mxu0 0.0
        %839 = vmatpush.msra.mxu0 0.0
        %840 = vmatpush.msra.mxu0 0.0
        %841 = vmatpush.msra.mxu0 0.0
        %842 = vmatpush.msra.mxu0 0.0
        %843 = vmatpush.msra.mxu0 0.0
        %844 = vmatpush.msra.mxu0 0.0
        %845 = vmatpush.msra.mxu0 0.0
        %846 = vmatpush.msra.mxu0 %v827
        %847 = vmatmul.f32.gmra.mxu0 %v829
        %v848 = vpop.f32.mrf.mxu0
        %v849 = vadd.f32 0.0, %v848
        %850 = vdwg.mxu0
        %v851 = vadd.f32 %v761, %v849
        %852 = vrot.lane.b32.xlu0 %v682, 120
        %v853 = vpop.permute.xlu0 %852
        %854 = vrot.lane.b32.xlu0 %v713, 120
        %v855 = vpop.permute.xlu0 %854
        %v856 = vsel %vm762, %v853, 0
        %v858 = vsel %vm762, %v855, 0
        %860 = vmatpush.xpose.msra.mxu0 0.0
        %861 = vmatpush.xpose.msra.mxu0 0.0
        %862 = vmatpush.xpose.msra.mxu0 0.0
        %863 = vmatpush.xpose.msra.mxu0 0.0
        %864 = vmatpush.xpose.msra.mxu0 0.0
        %865 = vmatpush.xpose.msra.mxu0 0.0
        %866 = vmatpush.xpose.msra.mxu0 0.0
        %867 = vmatpush.xpose.msra.mxu0 0.0
        %868 = vmatpush.xpose.msra.mxu0 0.0
        %869 = vmatpush.xpose.msra.mxu0 0.0
        %870 = vmatpush.xpose.msra.mxu0 0.0
        %871 = vmatpush.xpose.msra.mxu0 0.0
        %872 = vmatpush.xpose.msra.mxu0 0.0
        %873 = vmatpush.xpose.msra.mxu0 0.0
        %874 = vmatpush.xpose.msra.mxu0 0.0
        %875 = vmatpush.xpose.msra.mxu0 %v858
        %876 = vmatmul.f32.gmra.mxu0 %v856
        %v877 = vpop.f32.mrf.mxu0
        %v878 = vadd.f32 0.0, %v877
        %879 = vdwg.mxu0
        %v880 = vmul.f32 %v878, 0.35355338
        %v881 = vsel %vm790, -1e+09, %v880
        %v882 = vsel %vm762, %v881, -inf
        %883 = vmax.xlane.f32.xlu0 %v882
        %v884 = vpop.xlane.xlu0 %883
        %v885 = vsub.f32 %v881, %v884
        %v886 = vmul.f32 %v885, 1.442695
        %v887 = vpow.pop %v886
        %v888 = vsel %vm762, %v887, 0.0
        %889 = vadd.xlane.f32.xlu0 %v888
        %v890 = vpop.xlane.xlu0 %889
        %v891 = vrcp.pop %v890
        %v892 = vmul.f32 %v887, %v891
        %s893 = scalar_lea.vmem %s637, 8 [#allocation14]
        %894 = vst.msk [vmem:[%s893] sm:$0xff] %vm762, %v892
        %896 = vrot.lane.b32.xlu0 %v744, 120
        %v897 = vpop.permute.xlu0 %896
        %v900 = vsel %vm762, %v892, 0
        %902 = vmatpush.msra.mxu0 0.0
        %903 = vmatpush.msra.mxu0 0.0
        %904 = vmatpush.msra.mxu0 0.0
        %905 = vmatpush.msra.mxu0 0.0
        %906 = vmatpush.msra.mxu0 0.0
        %907 = vmatpush.msra.mxu0 0.0
        %908 = vmatpush.msra.mxu0 0.0
        %909 = vmatpush.msra.mxu0 0.0
        %910 = vmatpush.msra.mxu0 0.0
        %911 = vmatpush.msra.mxu0 0.0
        %912 = vmatpush.msra.mxu0 0.0
        %913 = vmatpush.msra.mxu0 0.0
        %914 = vmatpush.msra.mxu0 0.0
        %915 = vmatpush.msra.mxu0 0.0
        %916 = vmatpush.msra.mxu0 0.0
        %917 = vmatpush.msra.mxu0 %v897
        %918 = vmatmul.f32.gmra.mxu0 %v900
        %v919 = vpop.f32.mrf.mxu0
        %v920 = vadd.f32 0.0, %v919
        %921 = vdwg.mxu0
        %v922 = vld [vmem:[#allocation11 + $0x8] sm:$0xff]
        %v924 = vsel %vm762, %v920, 0
        %926 = vmatpush.msra.mxu0 0.0
        %927 = vmatpush.msra.mxu0 0.0
        %928 = vmatpush.msra.mxu0 0.0
        %929 = vmatpush.msra.mxu0 0.0
        %930 = vmatpush.msra.mxu0 0.0
        %931 = vmatpush.msra.mxu0 0.0
        %932 = vmatpush.msra.mxu0 0.0
        %933 = vmatpush.msra.mxu0 0.0
        %934 = vmatpush.msra.mxu0 0.0
        %935 = vmatpush.msra.mxu0 0.0
        %936 = vmatpush.msra.mxu0 0.0
        %937 = vmatpush.msra.mxu0 0.0
        %938 = vmatpush.msra.mxu0 0.0
        %939 = vmatpush.msra.mxu0 0.0
        %940 = vmatpush.msra.mxu0 0.0
        %941 = vmatpush.msra.mxu0 %v922
        %942 = vmatmul.f32.gmra.mxu0 %v924
        %v943 = vpop.f32.mrf.mxu0
        %v944 = vadd.f32 0.0, %v943
        %945 = vdwg.mxu0
        %v946 = vadd.f32 %v851, %v944
        %947 = vrot.lane.b32.xlu0 %v682, 112
        %v948 = vpop.permute.xlu0 %947
        %949 = vrot.lane.b32.xlu0 %v713, 112
        %v950 = vpop.permute.xlu0 %949
        %v951 = vsel %vm762, %v948, 0
        %v953 = vsel %vm762, %v950, 0
        %955 = vmatpush.xpose.msra.mxu0 0.0
        %956 = vmatpush.xpose.msra.mxu0 0.0
        %957 = vmatpush.xpose.msra.mxu0 0.0
        %958 = vmatpush.xpose.msra.mxu0 0.0
        %959 = vmatpush.xpose.msra.mxu0 0.0
        %960 = vmatpush.xpose.msra.mxu0 0.0
        %961 = vmatpush.xpose.msra.mxu0 0.0
        %962 = vmatpush.xpose.msra.mxu0 0.0
        %963 = vmatpush.xpose.msra.mxu0 0.0
        %964 = vmatpush.xpose.msra.mxu0 0.0
        %965 = vmatpush.xpose.msra.mxu0 0.0
        %966 = vmatpush.xpose.msra.mxu0 0.0
        %967 = vmatpush.xpose.msra.mxu0 0.0
        %968 = vmatpush.xpose.msra.mxu0 0.0
        %969 = vmatpush.xpose.msra.mxu0 0.0
        %970 = vmatpush.xpose.msra.mxu0 %v953
        %971 = vmatmul.f32.gmra.mxu0 %v951
        %v972 = vpop.f32.mrf.mxu0
        %v973 = vadd.f32 0.0, %v972
        %974 = vdwg.mxu0
        %v975 = vmul.f32 %v973, 0.35355338
        %v976 = vsel %vm790, -1e+09, %v975
        %v977 = vsel %vm762, %v976, -inf
        %978 = vmax.xlane.f32.xlu0 %v977
        %v979 = vpop.xlane.xlu0 %978
        %v980 = vsub.f32 %v976, %v979
        %v981 = vmul.f32 %v980, 1.442695
        %v982 = vpow.pop %v981
        %v983 = vsel %vm762, %v982, 0.0
        %984 = vadd.xlane.f32.xlu0 %v983
        %v985 = vpop.xlane.xlu0 %984
        %v986 = vrcp.pop %v985
        %v987 = vmul.f32 %v982, %v986
        %s988 = scalar_lea.vmem %s637, 16 [#allocation14]
        %989 = vst.msk [vmem:[%s988] sm:$0xff] %vm762, %v987
        %990 = vrot.lane.b32.xlu0 %v744, 112
        %v991 = vpop.permute.xlu0 %990
        %v994 = vsel %vm762, %v987, 0
        %996 = vmatpush.msra.mxu0 0.0
        %997 = vmatpush.msra.mxu0 0.0
        %998 = vmatpush.msra.mxu0 0.0
        %999 = vmatpush.msra.mxu0 0.0
        %1000 = vmatpush.msra.mxu0 0.0
        %1001 = vmatpush.msra.mxu0 0.0
        %1002 = vmatpush.msra.mxu0 0.0
        %1003 = vmatpush.msra.mxu0 0.0
        %1004 = vmatpush.msra.mxu0 0.0
        %1005 = vmatpush.msra.mxu0 0.0
        %1006 = vmatpush.msra.mxu0 0.0
        %1007 = vmatpush.msra.mxu0 0.0
        %1008 = vmatpush.msra.mxu0 0.0
        %1009 = vmatpush.msra.mxu0 0.0
        %1010 = vmatpush.msra.mxu0 0.0
        %1011 = vmatpush.msra.mxu0 %v991
        %1012 = vmatmul.f32.gmra.mxu0 %v994
        %v1013 = vpop.f32.mrf.mxu0
        %v1014 = vadd.f32 0.0, %v1013
        %1015 = vdwg.mxu0
        %v1016 = vld [vmem:[#allocation11 + $0x10] sm:$0xff]
        %v1018 = vsel %vm762, %v1014, 0
        %1020 = vmatpush.msra.mxu0 0.0
        %1021 = vmatpush.msra.mxu0 0.0
        %1022 = vmatpush.msra.mxu0 0.0
        %1023 = vmatpush.msra.mxu0 0.0
        %1024 = vmatpush.msra.mxu0 0.0
        %1025 = vmatpush.msra.mxu0 0.0
        %1026 = vmatpush.msra.mxu0 0.0
        %1027 = vmatpush.msra.mxu0 0.0
        %1028 = vmatpush.msra.mxu0 0.0
        %1029 = vmatpush.msra.mxu0 0.0
        %1030 = vmatpush.msra.mxu0 0.0
        %1031 = vmatpush.msra.mxu0 0.0
        %1032 = vmatpush.msra.mxu0 0.0
        %1033 = vmatpush.msra.mxu0 0.0
        %1034 = vmatpush.msra.mxu0 0.0
        %1035 = vmatpush.msra.mxu0 %v1016
        %1036 = vmatmul.f32.gmra.mxu0 %v1018
        %v1037 = vpop.f32.mrf.mxu0
        %v1038 = vadd.f32 0.0, %v1037
        %1039 = vdwg.mxu0
        %v1040 = vadd.f32 %v946, %v1038
        %1041 = vrot.lane.b32.xlu0 %v682, 104
        %v1042 = vpop.permute.xlu0 %1041
        %1043 = vrot.lane.b32.xlu0 %v713, 104
        %v1044 = vpop.permute.xlu0 %1043
        %v1045 = vsel %vm762, %v1042, 0
        %v1047 = vsel %vm762, %v1044, 0
        %1049 = vmatpush.xpose.msra.mxu0 0.0
        %1050 = vmatpush.xpose.msra.mxu0 0.0
        %1051 = vmatpush.xpose.msra.mxu0 0.0
        %1052 = vmatpush.xpose.msra.mxu0 0.0
        %1053 = vmatpush.xpose.msra.mxu0 0.0
        %1054 = vmatpush.xpose.msra.mxu0 0.0
        %1055 = vmatpush.xpose.msra.mxu0 0.0
        %1056 = vmatpush.xpose.msra.mxu0 0.0
        %1057 = vmatpush.xpose.msra.mxu0 0.0
        %1058 = vmatpush.xpose.msra.mxu0 0.0
        %1059 = vmatpush.xpose.msra.mxu0 0.0
        %1060 = vmatpush.xpose.msra.mxu0 0.0
        %1061 = vmatpush.xpose.msra.mxu0 0.0
        %1062 = vmatpush.xpose.msra.mxu0 0.0
        %1063 = vmatpush.xpose.msra.mxu0 0.0
        %1064 = vmatpush.xpose.msra.mxu0 %v1047
        %1065 = vmatmul.f32.gmra.mxu0 %v1045
        %v1066 = vpop.f32.mrf.mxu0
        %v1067 = vadd.f32 0.0, %v1066
        %1068 = vdwg.mxu0
        %v1069 = vmul.f32 %v1067, 0.35355338
        %v1070 = vsel %vm790, -1e+09, %v1069
        %v1071 = vsel %vm762, %v1070, -inf
        %1072 = vmax.xlane.f32.xlu0 %v1071
        %v1073 = vpop.xlane.xlu0 %1072
        %v1074 = vsub.f32 %v1070, %v1073
        %v1075 = vmul.f32 %v1074, 1.442695
        %v1076 = vpow.pop %v1075
        %v1077 = vsel %vm762, %v1076, 0.0
        %1078 = vadd.xlane.f32.xlu0 %v1077
        %v1079 = vpop.xlane.xlu0 %1078
        %v1080 = vrcp.pop %v1079
        %v1081 = vmul.f32 %v1076, %v1080
        %s1082 = scalar_lea.vmem %s637, 24 [#allocation14]
        %1083 = vst.msk [vmem:[%s1082] sm:$0xff] %vm762, %v1081
        %1084 = vrot.lane.b32.xlu0 %v744, 104
        %v1085 = vpop.permute.xlu0 %1084
        %v1088 = vsel %vm762, %v1081, 0
        %1090 = vmatpush.msra.mxu0 0.0
        %1091 = vmatpush.msra.mxu0 0.0
        %1092 = vmatpush.msra.mxu0 0.0
        %1093 = vmatpush.msra.mxu0 0.0
        %1094 = vmatpush.msra.mxu0 0.0
        %1095 = vmatpush.msra.mxu0 0.0
        %1096 = vmatpush.msra.mxu0 0.0
        %1097 = vmatpush.msra.mxu0 0.0
        %1098 = vmatpush.msra.mxu0 0.0
        %1099 = vmatpush.msra.mxu0 0.0
        %1100 = vmatpush.msra.mxu0 0.0
        %1101 = vmatpush.msra.mxu0 0.0
        %1102 = vmatpush.msra.mxu0 0.0
        %1103 = vmatpush.msra.mxu0 0.0
        %1104 = vmatpush.msra.mxu0 0.0
        %1105 = vmatpush.msra.mxu0 %v1085
        %1106 = vmatmul.f32.gmra.mxu0 %v1088
        %v1107 = vpop.f32.mrf.mxu0
        %v1108 = vadd.f32 0.0, %v1107
        %1109 = vdwg.mxu0
        %v1110 = vld [vmem:[#allocation11 + $0x18] sm:$0xff]
        %v1112 = vsel %vm762, %v1108, 0
        %1114 = vmatpush.msra.mxu0 0.0
        %1115 = vmatpush.msra.mxu0 0.0
        %1116 = vmatpush.msra.mxu0 0.0
        %1117 = vmatpush.msra.mxu0 0.0
        %1118 = vmatpush.msra.mxu0 0.0
        %1119 = vmatpush.msra.mxu0 0.0
        %1120 = vmatpush.msra.mxu0 0.0
        %1121 = vmatpush.msra.mxu0 0.0
        %1122 = vmatpush.msra.mxu0 0.0
        %1123 = vmatpush.msra.mxu0 0.0
        %1124 = vmatpush.msra.mxu0 0.0
        %1125 = vmatpush.msra.mxu0 0.0
        %1126 = vmatpush.msra.mxu0 0.0
        %1127 = vmatpush.msra.mxu0 0.0
        %1128 = vmatpush.msra.mxu0 0.0
        %1129 = vmatpush.msra.mxu0 %v1110
        %1130 = vmatmul.f32.gmra.mxu0 %v1112
        %v1131 = vpop.f32.mrf.mxu0
        %v1132 = vadd.f32 0.0, %v1131
        %1133 = vdwg.mxu0
        %v1134 = vadd.f32 %v1040, %v1132
        %1135 = vst.msk [vmem:[%s630] sm:$0xff] %vm660, %v1134
        %s1136 = sand.u32 %s346, 1
        %s1137 = scalar_lea.sflag [#allocation4], %s1136
        %s1138 = sand.u32 %s346, 1
        %s1139 = smul.addr %s1138, 8
        %s1140 = scalar_lea.vmem [#allocation13], %s1139
        %s1141 = sand.u32 %s372, 1
        %s1142 = scalar_lea.sflag [#allocation15], %s1141
        %s1143 = sand.u32 %s372, 1
        %s1144 = smul.addr %s1143, 32
        %s1145 = scalar_lea.vmem [#allocation14], %s1144
        // Predicated region
        $region97: #{tpu_custom_call.1} parent=71 // pred_check
          %p1146 = pneg %p356
        $region98: #{tpu_custom_call.1} parent=71 // pred_check_branch
          %1148 = sbr.rel (%p1146) target = $region100
        $region99: #{tpu_custom_call.1} parent=71 // pred_region
          %1150 = vsyncadd %s1137, 0
          %s1151 = smul.addr %s40, 8
          %s1152 = scalar_lea.hbm %s13, %s1151
          %s1154 = sshll.u32 %s1140, 4
          %s1155 = int_to_ptr.vmem [resolvable:$true] %s1154
          %s1156 = sshll.u32 %s1152, 4
          %s1157 = int_to_ptr.hbm [resolvable:$true] %s1156
          %1159 = dma.vmem_to_hbm [thread:$0]  %s1155, 128, %s1157, %s1137
        $region100: #{tpu_custom_call.1} parent=71 // pred_fallthru
          _
        // Predicated region
        $region101: #{tpu_custom_call.1} parent=71 // pred_check
          %p1160 = pneg %p382
        $region102: #{tpu_custom_call.1} parent=71 // pred_check_branch
          %1162 = sbr.rel (%p1160) target = $region104
        $region103: #{tpu_custom_call.1} parent=71 // pred_region
          %1164 = vsyncadd %s1142, 0
          %s1165 = smul.addr %s40, 4
          %s1166 = smul.addr %s1165, 8
          %s1167 = scalar_lea.hbm %s14, %s1166
          %s1168 = sshll.u32 %s1145, 4
          %s1169 = int_to_ptr.vmem [resolvable:$true] %s1168
          %s1170 = sshll.u32 %s1167, 4
          %s1171 = int_to_ptr.hbm [resolvable:$true] %s1170
          %1176 = dma.vmem_to_hbm [thread:$0]  %s1169, 512, %s1171, %s1142, 128, 128, 8
        $region104: #{tpu_custom_call.1} parent=71 // pred_fallthru
          _
      $region72: #{tpu_custom_call.1} parent=5 // pred_fallthru
        _
      %p1177 = scmp.le.s32.totalorder 2, %s35
      // Predicated region
      $region105: #{tpu_custom_call.1} parent=5 // pred_check
        %p1178 = pneg %p1177
      $region106: #{tpu_custom_call.1} parent=5 // pred_check_branch
        %1180 = sbr.rel (%p1178) target = $region108
      $region107: #{tpu_custom_call.1} parent=5 // pred_region
        %s1181 = ssub.s32 %s35, 2
        // Predicated region
        $region109: #{tpu_custom_call.1} parent=107 // pred_check
          %p1182 = pneg %p362
        $region110: #{tpu_custom_call.1} parent=107 // pred_check_branch
          %1184 = sbr.rel (%p1182) target = $region112
        $region111: #{tpu_custom_call.1} parent=107 // pred_region
          %s1185 = sand.u32 %s347, 1
          %s1186 = scalar_lea.sflag [#allocation4], %s1185
          %s1187 = sand.u32 %s347, 1
          %s1188 = smul.addr %s1187, 8
          %s1189 = scalar_lea.vmem [#allocation13], %s1188
          %1191 = dma.done %s1186, 128
        $region112: #{tpu_custom_call.1} parent=107 // pred_fallthru
          _
        // Predicated region
        $region113: #{tpu_custom_call.1} parent=107 // pred_check
          %p1192 = pneg %p388
        $region114: #{tpu_custom_call.1} parent=107 // pred_check_branch
          %1194 = sbr.rel (%p1192) target = $region116
        $region115: #{tpu_custom_call.1} parent=107 // pred_region
          %s1195 = sand.u32 %s373, 1
          %s1196 = scalar_lea.sflag [#allocation15], %s1195
          %s1197 = sand.u32 %s373, 1
          %s1198 = smul.addr %s1197, 32
          %s1199 = scalar_lea.vmem [#allocation14], %s1198
          %1201 = dma.done %s1196, 512
        $region116: #{tpu_custom_call.1} parent=107 // pred_fallthru
          _
      $region108: #{tpu_custom_call.1} parent=5 // pred_fallthru
        _
    $region6: #{tpu_custom_call.1} parent=1 // loop_footer
      %s39 = sadd.s32 1, %s35
    $region7: #{tpu_custom_call.1} parent=1 // loop_footer_branch
      %34 = sbr.rel target = $region3
    $region8: #{tpu_custom_call.1} parent=1 // loop_exit
      _
    %1202 = vsyncpa [#allocation3], 1
    %s1203 = scalar_lea.sflag [#allocation3], 1
    %1204 = vsyncpa %s1203, 1
    %1205 = vsyncpa [#allocation6], 1
    %s1206 = scalar_lea.sflag [#allocation6], 1
    %1207 = vsyncpa %s1206, 1
    %1208 = vsyncpa [#allocation9], 1
    %1209 = vsyncpa [#allocation12], 1
    %1210 = vsyncpa [#allocation4], 1
    %s1211 = scalar_lea.sflag [#allocation4], 1
    %1212 = vsyncpa %s1211, 1
    %1213 = vsyncpa [#allocation15], 1
    %s1214 = scalar_lea.sflag [#allocation15], 1
    %1215 = vsyncpa %s1214, 1

</llo_original>
